<compile_context>
chip_gen: v7x
topology: tpu7x:2x2x1
jax: 0.10.0
libtpu: 0.0.40
codegen_flags: <defaults>
</compile_context>

<pallas_src>
import math
import functools

import numpy as np
import jax
import jax.numpy as jnp
from jax.experimental import pallas as pl
from jax.experimental.pallas import tpu as pltpu


def _s4d_kernel_body(w_re_ref, w_im_ref, p_re_ref, p_im_ref, k_ref, *, n2):
    """One (th, tl) output tile.

    w_*_ref : (1, th, N2)   per-tile weight  W_i = exp(dtA * i*tl)
    p_*_ref : (N2, th, tl)  resident table   P   = 2*C' * exp(dtA * j)
    k_ref   : (th, tl)      K[:, i*tl:(i+1)*tl]
    """
    acc = jnp.zeros(k_ref.shape, jnp.float32)
    # Per-n FMA into the (th, tl) accumulator: pure VALU work, no sublane
    # reduce, no 3-D intermediates (review item: avoid jnp.sum(axis=1)).
    for n in range(n2):
        wr = w_re_ref[0, :, n:n + 1]          # (th, 1) -> lane-broadcast
        wi = w_im_ref[0, :, n:n + 1]
        acc = acc + (wr * p_re_ref[n, :, :] - wi * p_im_ref[n, :, :])
    k_ref[...] = acc.astype(k_ref.dtype)


def _geom_table(init_re, init_im, step_re, step_im, n):
    """table[..., j] = init * step**j  for j in [0, n), built by prefix doubling.

    O(log2 n) complex multiplies over the growing table instead of O(n)
    exp/cos/sin per element; cos/sin is only ever evaluated on the base step,
    which also keeps phase-rounding error small for long L.
    """
    ere = init_re[..., None]
    eim = init_im[..., None]
    sre = step_re[..., None]
    sim = step_im[..., None]
    length = 1
    while length < n:
        nre = ere * sre - eim * sim
        nim = ere * sim + eim * sre
        ere = jnp.concatenate([ere, nre], axis=-1)
        eim = jnp.concatenate([eim, nim], axis=-1)
        s2re = sre * sre - sim * sim
        s2im = 2.0 * sre * sim
        sre, sim = s2re, s2im
        length *= 2
    return ere[..., :n], eim[..., :n]


@functools.partial(jax.jit, static_argnames=("L", "tl", "th"))
def s4d_kernel_pallas(log_dt, c_re, c_im, log_a_real, a_imag, L, tl=None, th=8):
    """Returns K of shape (H, L), float32 — same semantics as S4DKernel.forward(L)."""
    H, N2 = c_re.shape
    f32 = jnp.float32

    if tl is None:
        tl = L if L <= 512 else 512
    assert L % tl == 0 and (tl == L or tl % 128 == 0), (L, tl)
    if H % th != 0:
        th = H                      # fall back to full-H block (always legal)
    LT = L // tl
    grid = (H // th, LT)

    # ---- one-time, grid-invariant parameter prep (hoisted out of kernel) ----
    dt = jnp.exp(log_dt.astype(f32))[:, None]                 # (H, 1)
    a_re = -jnp.exp(log_a_real.astype(f32))                   # (H, N2)
    a_im = a_imag.astype(f32)
    dta_re = a_re * dt                                        # dtA = A * dt
    dta_im = a_im * dt

    e = jnp.exp(dta_re)                                       # exp(dtA) - 1
    em1_re = e * jnp.cos(dta_im) - 1.0
    em1_im = e * jnp.sin(dta_im)
    cr, ci = c_re.astype(f32), c_im.astype(f32)
    num_re = cr * em1_re - ci * em1_im                        # C*(exp(dtA)-1)
    num_im = cr * em1_im + ci * em1_re
    inv_den = 1.0 / (a_re * a_re + a_im * a_im)               # ... / A
    b_re = 2.0 * (num_re * a_re + num_im * a_im) * inv_den    # fold final 2x
    b_im = 2.0 * (num_im * a_re - num_re * a_im) * inv_den

    # ---- P[n, h, j] = B[h,n] * exp(dtA[h,n]*j),  j in [0, tl)  (N2, H, tl) ---
    # Built directly in (N2, H, ...) layout so no big transpose is needed.
    s_re = e * jnp.cos(dta_im)                                # step = exp(dtA)
    s_im = e * jnp.sin(dta_im)
    p_re, p_im = _geom_table(b_re.T, b_im.T, s_re.T, s_im.T, tl)   # (N2, H, tl)

    # ---- W[i, h, n] = exp(dtA[h,n] * i*tl),  i in [0, LT)  -> (LT, H, N2) ----
    mag2 = jnp.exp(dta_re * tl)                               # step = exp(dtA*tl)
    s2_re = mag2 * jnp.cos(dta_im * tl)
    s2_im = mag2 * jnp.sin(dta_im * tl)
    w_re, w_im = _geom_table(jnp.ones_like(b_re), jnp.zeros_like(b_im),
                             s2_re, s2_im, LT)                # (H, N2, LT)
    w_re = jnp.transpose(w_re, (2, 0, 1))                     # (LT, H, N2) tiny
    w_im = jnp.transpose(w_im, (2, 0, 1))

    # Explicit VMEM budget: double-buffered P/W blocks + output, with headroom.
    # (Raises the 16 MiB v5e default; capped at v7x's 64 MiB per TensorCore.)
    p_block = N2 * th * tl * 4
    w_block = th * N2 * 4
    o_block = th * tl * 4
    vmem_bytes = 4 * p_block + 4 * w_block + 2 * o_block + (4 << 20)
    vmem_bytes = int(min(max(vmem_bytes, 32 << 20), 64 << 20))

    kernel = functools.partial(_s4d_kernel_body, n2=N2)
    return pl.pallas_call(
        kernel,
        out_shape=jax.ShapeDtypeStruct((H, L), f32),
        grid_spec=pltpu.PrefetchScalarGridSpec(
            num_scalar_prefetch=0,
            grid=grid,
            in_specs=[
                pl.BlockSpec((1, th, N2), lambda h, i: (i, h, 0)),    # W real
                pl.BlockSpec((1, th, N2), lambda h, i: (i, h, 0)),    # W imag
                pl.BlockSpec((N2, th, tl), lambda h, i: (0, h, 0)),   # P real
                pl.BlockSpec((N2, th, tl), lambda h, i: (0, h, 0)),   # P imag
            ],
            out_specs=pl.BlockSpec((th, tl), lambda h, i: (h, i)),
        ),
        compiler_params=pltpu.CompilerParams(
            dimension_semantics=("parallel", "parallel"),
            vmem_limit_bytes=vmem_bytes),
    )(w_re, w_im, p_re, p_im)


def s4d_reference_np(log_dt, c_re, c_im, log_a_real, a_imag, L):
    """High-precision numpy reference mirroring the PyTorch forward exactly."""
    log_dt = np.asarray(log_dt, np.float64)
    C = np.asarray(c_re, np.float64) + 1j * np.asarray(c_im, np.float64)
    A = -np.exp(np.asarray(log_a_real, np.float64)) + 1j * np.asarray(a_imag, np.float64)
    dt = np.exp(log_dt)
    dtA = A * dt[:, None]
    K = dtA[:, :, None] * np.arange(L)
    C = C * (np.exp(dtA) - 1.0) / A
    K = 2 * np.einsum('hn,hnl->hl', C, np.exp(K)).real
    return K.astype(np.float32)


if __name__ == "__main__":
    # Module hyperparameters (small, consistent with S4DKernel(d_model, N)).
    H = 8          # d_model
    N = 64         # state size -> N2 = 32
    N2 = N // 2
    L = 1024       # sequence length (grid = (1, 2) at th=8, tl=512)
    dt_min, dt_max = 0.001, 0.1

    # Deterministic parameter init (matches __init__ shapes / semantics).
    key = jax.random.PRNGKey(0)
    k_dt, k_cre, k_cim = jax.random.split(key, 3)

    log_dt = (jax.random.uniform(k_dt, (H,), dtype=jnp.float32)
              * (math.log(dt_max) - math.log(dt_min)) + math.log(dt_min))
    c_re = jax.random.normal(k_cre, (H, N2), dtype=jnp.float32)
    c_im = jax.random.normal(k_cim, (H, N2), dtype=jnp.float32)
    log_a_real = jnp.log(0.5 * jnp.ones((H, N2), dtype=jnp.float32))
    a_imag = math.pi * jnp.broadcast_to(
        jnp.arange(N2, dtype=jnp.float32)[None, :], (H, N2))

    # Run the Pallas kernel.
    K = s4d_kernel_pallas(log_dt, c_re, c_im, log_a_real, a_imag, L=L)
    K = jax.block_until_ready(K)

    # Check against a float64 reference of the PyTorch forward.
    K_ref = s4d_reference_np(np.asarray(log_dt), np.asarray(c_re),
                             np.asarray(c_im), np.asarray(log_a_real),
                             np.asarray(a_imag), L)
    assert K.shape == (H, L)
    np.testing.assert_allclose(np.asarray(K), K_ref, rtol=1e-2, atol=1e-2)

    print("KERNEL_OK")
</pallas_src>

<mosaic_0001>
module attributes {stable_mosaic.version = 11 : i64} {
  func.func @_s4d_kernel_body(%arg0: i32, %arg1: i32, %arg2: memref<1x8x32xf32, #tpu.memory_space<vmem>>, %arg3: memref<1x8x32xf32, #tpu.memory_space<vmem>>, %arg4: memref<32x8x512xf32, #tpu.memory_space<vmem>>, %arg5: memref<32x8x512xf32, #tpu.memory_space<vmem>>, %arg6: memref<8x512xf32, #tpu.memory_space<vmem>>) attributes {dimension_semantics = [#tpu.dimension_semantics<parallel>, #tpu.dimension_semantics<parallel>], iteration_bounds = array<i64: 1, 2>, scalar_prefetch = 0 : i64, scratch_operands = 0 : i64, tpu.core_type = #tpu.core_type<tc>, window_params = [{transform_indices = @transform_0, window_bounds = array<i64: 1, 8, 32>}, {transform_indices = @transform_1, window_bounds = array<i64: 1, 8, 32>}, {transform_indices = @transform_2, window_bounds = array<i64: 32, 8, 512>}, {transform_indices = @transform_3, window_bounds = array<i64: 32, 8, 512>}, {transform_indices = @transform_4, window_bounds = array<i64: 8, 512>}]} {
    %cst = arith.constant 0.000000e+00 : f32
    %0 = vector.broadcast %cst : f32 to vector<8x512xf32>
    %c0 = arith.constant 0 : index
    %c0_0 = arith.constant 0 : index
    %c0_1 = arith.constant 0 : index
    %1 = vector.load %arg2[%c0, %c0_0, %c0_1] : memref<1x8x32xf32, #tpu.memory_space<vmem>>, vector<1x8x1xf32>
    %2 = vector.shape_cast %1 : vector<1x8x1xf32> to vector<8x1xf32>
    %c0_2 = arith.constant 0 : index
    %c0_3 = arith.constant 0 : index
    %c0_4 = arith.constant 0 : index
    %3 = vector.load %arg3[%c0_2, %c0_3, %c0_4] : memref<1x8x32xf32, #tpu.memory_space<vmem>>, vector<1x8x1xf32>
    %4 = vector.shape_cast %3 : vector<1x8x1xf32> to vector<8x1xf32>
    %c0_5 = arith.constant 0 : index
    %c0_6 = arith.constant 0 : index
    %c0_7 = arith.constant 0 : index
    %5 = vector.load %arg4[%c0_5, %c0_6, %c0_7] : memref<32x8x512xf32, #tpu.memory_space<vmem>>, vector<1x8x512xf32>
    %6 = vector.shape_cast %5 : vector<1x8x512xf32> to vector<8x512xf32>
    %7 = vector.broadcast %2 : vector<8x1xf32> to vector<8x512xf32>
    %8 = arith.mulf %7, %6 : vector<8x512xf32>
    %c0_8 = arith.constant 0 : index
    %c0_9 = arith.constant 0 : index
    %c0_10 = arith.constant 0 : index
    %9 = vector.load %arg5[%c0_8, %c0_9, %c0_10] : memref<32x8x512xf32, #tpu.memory_space<vmem>>, vector<1x8x512xf32>
    %10 = vector.shape_cast %9 : vector<1x8x512xf32> to vector<8x512xf32>
    %11 = vector.broadcast %4 : vector<8x1xf32> to vector<8x512xf32>
    %12 = arith.mulf %11, %10 : vector<8x512xf32>
    %13 = arith.subf %8, %12 : vector<8x512xf32>
    %14 = arith.addf %0, %13 : vector<8x512xf32>
    %c0_11 = arith.constant 0 : index
    %c0_12 = arith.constant 0 : index
    %c1 = arith.constant 1 : index
    %15 = vector.load %arg2[%c0_11, %c0_12, %c1] : memref<1x8x32xf32, #tpu.memory_space<vmem>>, vector<1x8x1xf32>
    %16 = vector.shape_cast %15 : vector<1x8x1xf32> to vector<8x1xf32>
    %c0_13 = arith.constant 0 : index
    %c0_14 = arith.constant 0 : index
    %c1_15 = arith.constant 1 : index
    %17 = vector.load %arg3[%c0_13, %c0_14, %c1_15] : memref<1x8x32xf32, #tpu.memory_space<vmem>>, vector<1x8x1xf32>
    %18 = vector.shape_cast %17 : vector<1x8x1xf32> to vector<8x1xf32>
    %c1_16 = arith.constant 1 : index
    %c0_17 = arith.constant 0 : index
    %c0_18 = arith.constant 0 : index
    %19 = vector.load %arg4[%c1_16, %c0_17, %c0_18] : memref<32x8x512xf32, #tpu.memory_space<vmem>>, vector<1x8x512xf32>
    %20 = vector.shape_cast %19 : vector<1x8x512xf32> to vector<8x512xf32>
    %21 = vector.broadcast %16 : vector<8x1xf32> to vector<8x512xf32>
    %22 = arith.mulf %21, %20 : vector<8x512xf32>
    %c1_19 = arith.constant 1 : index
    %c0_20 = arith.constant 0 : index
    %c0_21 = arith.constant 0 : index
    %23 = vector.load %arg5[%c1_19, %c0_20, %c0_21] : memref<32x8x512xf32, #tpu.memory_space<vmem>>, vector<1x8x512xf32>
    %24 = vector.shape_cast %23 : vector<1x8x512xf32> to vector<8x512xf32>
    %25 = vector.broadcast %18 : vector<8x1xf32> to vector<8x512xf32>
    %26 = arith.mulf %25, %24 : vector<8x512xf32>
    %27 = arith.subf %22, %26 : vector<8x512xf32>
    %28 = arith.addf %14, %27 : vector<8x512xf32>
    %c0_22 = arith.constant 0 : index
    %c0_23 = arith.constant 0 : index
    %c2 = arith.constant 2 : index
    %29 = vector.load %arg2[%c0_22, %c0_23, %c2] : memref<1x8x32xf32, #tpu.memory_space<vmem>>, vector<1x8x1xf32>
    %30 = vector.shape_cast %29 : vector<1x8x1xf32> to vector<8x1xf32>
    %c0_24 = arith.constant 0 : index
    %c0_25 = arith.constant 0 : index
    %c2_26 = arith.constant 2 : index
    %31 = vector.load %arg3[%c0_24, %c0_25, %c2_26] : memref<1x8x32xf32, #tpu.memory_space<vmem>>, vector<1x8x1xf32>
    %32 = vector.shape_cast %31 : vector<1x8x1xf32> to vector<8x1xf32>
    %c2_27 = arith.constant 2 : index
    %c0_28 = arith.constant 0 : index
    %c0_29 = arith.constant 0 : index
    %33 = vector.load %arg4[%c2_27, %c0_28, %c0_29] : memref<32x8x512xf32, #tpu.memory_space<vmem>>, vector<1x8x512xf32>
    %34 = vector.shape_cast %33 : vector<1x8x512xf32> to vector<8x512xf32>
    %35 = vector.broadcast %30 : vector<8x1xf32> to vector<8x512xf32>
    %36 = arith.mulf %35, %34 : vector<8x512xf32>
    %c2_30 = arith.constant 2 : index
    %c0_31 = arith.constant 0 : index
    %c0_32 = arith.constant 0 : index
    %37 = vector.load %arg5[%c2_30, %c0_31, %c0_32] : memref<32x8x512xf32, #tpu.memory_space<vmem>>, vector<1x8x512xf32>
    %38 = vector.shape_cast %37 : vector<1x8x512xf32> to vector<8x512xf32>
    %39 = vector.broadcast %32 : vector<8x1xf32> to vector<8x512xf32>
    %40 = arith.mulf %39, %38 : vector<8x512xf32>
    %41 = arith.subf %36, %40 : vector<8x512xf32>
    %42 = arith.addf %28, %41 : vector<8x512xf32>
    %c0_33 = arith.constant 0 : index
    %c0_34 = arith.constant 0 : index
    %c3 = arith.constant 3 : index
    %43 = vector.load %arg2[%c0_33, %c0_34, %c3] : memref<1x8x32xf32, #tpu.memory_space<vmem>>, vector<1x8x1xf32>
    %44 = vector.shape_cast %43 : vector<1x8x1xf32> to vector<8x1xf32>
    %c0_35 = arith.constant 0 : index
    %c0_36 = arith.constant 0 : index
    %c3_37 = arith.constant 3 : index
    %45 = vector.load %arg3[%c0_35, %c0_36, %c3_37] : memref<1x8x32xf32, #tpu.memory_space<vmem>>, vector<1x8x1xf32>
    %46 = vector.shape_cast %45 : vector<1x8x1xf32> to vector<8x1xf32>
    %c3_38 = arith.constant 3 : index
    %c0_39 = arith.constant 0 : index
    %c0_40 = arith.constant 0 : index
    %47 = vector.load %arg4[%c3_38, %c0_39, %c0_40] : memref<32x8x512xf32, #tpu.memory_space<vmem>>, vector<1x8x512xf32>
    %48 = vector.shape_cast %47 : vector<1x8x512xf32> to vector<8x512xf32>
    %49 = vector.broadcast %44 : vector<8x1xf32> to vector<8x512xf32>
    %50 = arith.mulf %49, %48 : vector<8x512xf32>
    %c3_41 = arith.constant 3 : index
    %c0_42 = arith.constant 0 : index
    %c0_43 = arith.constant 0 : index
    %51 = vector.load %arg5[%c3_41, %c0_42, %c0_43] : memref<32x8x512xf32, #tpu.memory_space<vmem>>, vector<1x8x512xf32>
    %52 = vector.shape_cast %51 : vector<1x8x512xf32> to vector<8x512xf32>
    %53 = vector.broadcast %46 : vector<8x1xf32> to vector<8x512xf32>
    %54 = arith.mulf %53, %52 : vector<8x512xf32>
    %55 = arith.subf %50, %54 : vector<8x512xf32>
    %56 = arith.addf %42, %55 : vector<8x512xf32>
    %c0_44 = arith.constant 0 : index
    %c0_45 = arith.constant 0 : index
    %c4 = arith.constant 4 : index
    %57 = vector.load %arg2[%c0_44, %c0_45, %c4] : memref<1x8x32xf32, #tpu.memory_space<vmem>>, vector<1x8x1xf32>
    %58 = vector.shape_cast %57 : vector<1x8x1xf32> to vector<8x1xf32>
    %c0_46 = arith.constant 0 : index
    %c0_47 = arith.constant 0 : index
    %c4_48 = arith.constant 4 : index
    %59 = vector.load %arg3[%c0_46, %c0_47, %c4_48] : memref<1x8x32xf32, #tpu.memory_space<vmem>>, vector<1x8x1xf32>
    %60 = vector.shape_cast %59 : vector<1x8x1xf32> to vector<8x1xf32>
    %c4_49 = arith.constant 4 : index
    %c0_50 = arith.constant 0 : index
    %c0_51 = arith.constant 0 : index
    %61 = vector.load %arg4[%c4_49, %c0_50, %c0_51] : memref<32x8x512xf32, #tpu.memory_space<vmem>>, vector<1x8x512xf32>
    %62 = vector.shape_cast %61 : vector<1x8x512xf32> to vector<8x512xf32>
    %63 = vector.broadcast %58 : vector<8x1xf32> to vector<8x512xf32>
    %64 = arith.mulf %63, %62 : vector<8x512xf32>
    %c4_52 = arith.constant 4 : index
    %c0_53 = arith.constant 0 : index
    %c0_54 = arith.constant 0 : index
    %65 = vector.load %arg5[%c4_52, %c0_53, %c0_54] : memref<32x8x512xf32, #tpu.memory_space<vmem>>, vector<1x8x512xf32>
    %66 = vector.shape_cast %65 : vector<1x8x512xf32> to vector<8x512xf32>
    %67 = vector.broadcast %60 : vector<8x1xf32> to vector<8x512xf32>
    %68 = arith.mulf %67, %66 : vector<8x512xf32>
    %69 = arith.subf %64, %68 : vector<8x512xf32>
    %70 = arith.addf %56, %69 : vector<8x512xf32>
    %c0_55 = arith.constant 0 : index
    %c0_56 = arith.constant 0 : index
    %c5 = arith.constant 5 : index
    %71 = vector.load %arg2[%c0_55, %c0_56, %c5] : memref<1x8x32xf32, #tpu.memory_space<vmem>>, vector<1x8x1xf32>
    %72 = vector.shape_cast %71 : vector<1x8x1xf32> to vector<8x1xf32>
    %c0_57 = arith.constant 0 : index
    %c0_58 = arith.constant 0 : index
    %c5_59 = arith.constant 5 : index
    %73 = vector.load %arg3[%c0_57, %c0_58, %c5_59] : memref<1x8x32xf32, #tpu.memory_space<vmem>>, vector<1x8x1xf32>
    %74 = vector.shape_cast %73 : vector<1x8x1xf32> to vector<8x1xf32>
    %c5_60 = arith.constant 5 : index
    %c0_61 = arith.constant 0 : index
    %c0_62 = arith.constant 0 : index
    %75 = vector.load %arg4[%c5_60, %c0_61, %c0_62] : memref<32x8x512xf32, #tpu.memory_space<vmem>>, vector<1x8x512xf32>
    %76 = vector.shape_cast %75 : vector<1x8x512xf32> to vector<8x512xf32>
    %77 = vector.broadcast %72 : vector<8x1xf32> to vector<8x512xf32>
    %78 = arith.mulf %77, %76 : vector<8x512xf32>
    %c5_63 = arith.constant 5 : index
    %c0_64 = arith.constant 0 : index
    %c0_65 = arith.constant 0 : index
    %79 = vector.load %arg5[%c5_63, %c0_64, %c0_65] : memref<32x8x512xf32, #tpu.memory_space<vmem>>, vector<1x8x512xf32>
    %80 = vector.shape_cast %79 : vector<1x8x512xf32> to vector<8x512xf32>
    %81 = vector.broadcast %74 : vector<8x1xf32> to vector<8x512xf32>
    %82 = arith.mulf %81, %80 : vector<8x512xf32>
    %83 = arith.subf %78, %82 : vector<8x512xf32>
    %84 = arith.addf %70, %83 : vector<8x512xf32>
    %c0_66 = arith.constant 0 : index
    %c0_67 = arith.constant 0 : index
    %c6 = arith.constant 6 : index
    %85 = vector.load %arg2[%c0_66, %c0_67, %c6] : memref<1x8x32xf32, #tpu.memory_space<vmem>>, vector<1x8x1xf32>
    %86 = vector.shape_cast %85 : vector<1x8x1xf32> to vector<8x1xf32>
    %c0_68 = arith.constant 0 : index
    %c0_69 = arith.constant 0 : index
    %c6_70 = arith.constant 6 : index
    %87 = vector.load %arg3[%c0_68, %c0_69, %c6_70] : memref<1x8x32xf32, #tpu.memory_space<vmem>>, vector<1x8x1xf32>
    %88 = vector.shape_cast %87 : vector<1x8x1xf32> to vector<8x1xf32>
    %c6_71 = arith.constant 6 : index
    %c0_72 = arith.constant 0 : index
    %c0_73 = arith.constant 0 : index
    %89 = vector.load %arg4[%c6_71, %c0_72, %c0_73] : memref<32x8x512xf32, #tpu.memory_space<vmem>>, vector<1x8x512xf32>
    %90 = vector.shape_cast %89 : vector<1x8x512xf32> to vector<8x512xf32>
    %91 = vector.broadcast %86 : vector<8x1xf32> to vector<8x512xf32>
    %92 = arith.mulf %91, %90 : vector<8x512xf32>
    %c6_74 = arith.constant 6 : index
    %c0_75 = arith.constant 0 : index
    %c0_76 = arith.constant 0 : index
    %93 = vector.load %arg5[%c6_74, %c0_75, %c0_76] : memref<32x8x512xf32, #tpu.memory_space<vmem>>, vector<1x8x512xf32>
    %94 = vector.shape_cast %93 : vector<1x8x512xf32> to vector<8x512xf32>
    %95 = vector.broadcast %88 : vector<8x1xf32> to vector<8x512xf32>
    %96 = arith.mulf %95, %94 : vector<8x512xf32>
    %97 = arith.subf %92, %96 : vector<8x512xf32>
    %98 = arith.addf %84, %97 : vector<8x512xf32>
    %c0_77 = arith.constant 0 : index
    %c0_78 = arith.constant 0 : index
    %c7 = arith.constant 7 : index
    %99 = vector.load %arg2[%c0_77, %c0_78, %c7] : memref<1x8x32xf32, #tpu.memory_space<vmem>>, vector<1x8x1xf32>
    %100 = vector.shape_cast %99 : vector<1x8x1xf32> to vector<8x1xf32>
    %c0_79 = arith.constant 0 : index
    %c0_80 = arith.constant 0 : index
    %c7_81 = arith.constant 7 : index
    %101 = vector.load %arg3[%c0_79, %c0_80, %c7_81] : memref<1x8x32xf32, #tpu.memory_space<vmem>>, vector<1x8x1xf32>
    %102 = vector.shape_cast %101 : vector<1x8x1xf32> to vector<8x1xf32>
    %c7_82 = arith.constant 7 : index
    %c0_83 = arith.constant 0 : index
    %c0_84 = arith.constant 0 : index
    %103 = vector.load %arg4[%c7_82, %c0_83, %c0_84] : memref<32x8x512xf32, #tpu.memory_space<vmem>>, vector<1x8x512xf32>
    %104 = vector.shape_cast %103 : vector<1x8x512xf32> to vector<8x512xf32>
    %105 = vector.broadcast %100 : vector<8x1xf32> to vector<8x512xf32>
    %106 = arith.mulf %105, %104 : vector<8x512xf32>
    %c7_85 = arith.constant 7 : index
    %c0_86 = arith.constant 0 : index
    %c0_87 = arith.constant 0 : index
    %107 = vector.load %arg5[%c7_85, %c0_86, %c0_87] : memref<32x8x512xf32, #tpu.memory_space<vmem>>, vector<1x8x512xf32>
    %108 = vector.shape_cast %107 : vector<1x8x512xf32> to vector<8x512xf32>
    %109 = vector.broadcast %102 : vector<8x1xf32> to vector<8x512xf32>
    %110 = arith.mulf %109, %108 : vector<8x512xf32>
    %111 = arith.subf %106, %110 : vector<8x512xf32>
    %112 = arith.addf %98, %111 : vector<8x512xf32>
    %c0_88 = arith.constant 0 : index
    %c0_89 = arith.constant 0 : index
    %c8 = arith.constant 8 : index
    %113 = vector.load %arg2[%c0_88, %c0_89, %c8] : memref<1x8x32xf32, #tpu.memory_space<vmem>>, vector<1x8x1xf32>
    %114 = vector.shape_cast %113 : vector<1x8x1xf32> to vector<8x1xf32>
    %c0_90 = arith.constant 0 : index
    %c0_91 = arith.constant 0 : index
    %c8_92 = arith.constant 8 : index
    %115 = vector.load %arg3[%c0_90, %c0_91, %c8_92] : memref<1x8x32xf32, #tpu.memory_space<vmem>>, vector<1x8x1xf32>
    %116 = vector.shape_cast %115 : vector<1x8x1xf32> to vector<8x1xf32>
    %c8_93 = arith.constant 8 : index
    %c0_94 = arith.constant 0 : index
    %c0_95 = arith.constant 0 : index
    %117 = vector.load %arg4[%c8_93, %c0_94, %c0_95] : memref<32x8x512xf32, #tpu.memory_space<vmem>>, vector<1x8x512xf32>
    %118 = vector.shape_cast %117 : vector<1x8x512xf32> to vector<8x512xf32>
    %119 = vector.broadcast %114 : vector<8x1xf32> to vector<8x512xf32>
    %120 = arith.mulf %119, %118 : vector<8x512xf32>
    %c8_96 = arith.constant 8 : index
    %c0_97 = arith.constant 0 : index
    %c0_98 = arith.constant 0 : index
    %121 = vector.load %arg5[%c8_96, %c0_97, %c0_98] : memref<32x8x512xf32, #tpu.memory_space<vmem>>, vector<1x8x512xf32>
    %122 = vector.shape_cast %121 : vector<1x8x512xf32> to vector<8x512xf32>
    %123 = vector.broadcast %116 : vector<8x1xf32> to vector<8x512xf32>
    %124 = arith.mulf %123, %122 : vector<8x512xf32>
    %125 = arith.subf %120, %124 : vector<8x512xf32>
    %126 = arith.addf %112, %125 : vector<8x512xf32>
    %c0_99 = arith.constant 0 : index
    %c0_100 = arith.constant 0 : index
    %c9 = arith.constant 9 : index
    %127 = vector.load %arg2[%c0_99, %c0_100, %c9] : memref<1x8x32xf32, #tpu.memory_space<vmem>>, vector<1x8x1xf32>
    %128 = vector.shape_cast %127 : vector<1x8x1xf32> to vector<8x1xf32>
    %c0_101 = arith.constant 0 : index
    %c0_102 = arith.constant 0 : index
    %c9_103 = arith.constant 9 : index
    %129 = vector.load %arg3[%c0_101, %c0_102, %c9_103] : memref<1x8x32xf32, #tpu.memory_space<vmem>>, vector<1x8x1xf32>
    %130 = vector.shape_cast %129 : vector<1x8x1xf32> to vector<8x1xf32>
    %c9_104 = arith.constant 9 : index
    %c0_105 = arith.constant 0 : index
    %c0_106 = arith.constant 0 : index
    %131 = vector.load %arg4[%c9_104, %c0_105, %c0_106] : memref<32x8x512xf32, #tpu.memory_space<vmem>>, vector<1x8x512xf32>
    %132 = vector.shape_cast %131 : vector<1x8x512xf32> to vector<8x512xf32>
    %133 = vector.broadcast %128 : vector<8x1xf32> to vector<8x512xf32>
    %134 = arith.mulf %133, %132 : vector<8x512xf32>
    %c9_107 = arith.constant 9 : index
    %c0_108 = arith.constant 0 : index
    %c0_109 = arith.constant 0 : index
    %135 = vector.load %arg5[%c9_107, %c0_108, %c0_109] : memref<32x8x512xf32, #tpu.memory_space<vmem>>, vector<1x8x512xf32>
    %136 = vector.shape_cast %135 : vector<1x8x512xf32> to vector<8x512xf32>
    %137 = vector.broadcast %130 : vector<8x1xf32> to vector<8x512xf32>
    %138 = arith.mulf %137, %136 : vector<8x512xf32>
    %139 = arith.subf %134, %138 : vector<8x512xf32>
    %140 = arith.addf %126, %139 : vector<8x512xf32>
    %c0_110 = arith.constant 0 : index
    %c0_111 = arith.constant 0 : index
    %c10 = arith.constant 10 : index
    %141 = vector.load %arg2[%c0_110, %c0_111, %c10] : memref<1x8x32xf32, #tpu.memory_space<vmem>>, vector<1x8x1xf32>
    %142 = vector.shape_cast %141 : vector<1x8x1xf32> to vector<8x1xf32>
    %c0_112 = arith.constant 0 : index
    %c0_113 = arith.constant 0 : index
    %c10_114 = arith.constant 10 : index
    %143 = vector.load %arg3[%c0_112, %c0_113, %c10_114] : memref<1x8x32xf32, #tpu.memory_space<vmem>>, vector<1x8x1xf32>
    %144 = vector.shape_cast %143 : vector<1x8x1xf32> to vector<8x1xf32>
    %c10_115 = arith.constant 10 : index
    %c0_116 = arith.constant 0 : index
    %c0_117 = arith.constant 0 : index
    %145 = vector.load %arg4[%c10_115, %c0_116, %c0_117] : memref<32x8x512xf32, #tpu.memory_space<vmem>>, vector<1x8x512xf32>
    %146 = vector.shape_cast %145 : vector<1x8x512xf32> to vector<8x512xf32>
    %147 = vector.broadcast %142 : vector<8x1xf32> to vector<8x512xf32>
    %148 = arith.mulf %147, %146 : vector<8x512xf32>
    %c10_118 = arith.constant 10 : index
    %c0_119 = arith.constant 0 : index
    %c0_120 = arith.constant 0 : index
    %149 = vector.load %arg5[%c10_118, %c0_119, %c0_120] : memref<32x8x512xf32, #tpu.memory_space<vmem>>, vector<1x8x512xf32>
    %150 = vector.shape_cast %149 : vector<1x8x512xf32> to vector<8x512xf32>
    %151 = vector.broadcast %144 : vector<8x1xf32> to vector<8x512xf32>
    %152 = arith.mulf %151, %150 : vector<8x512xf32>
    %153 = arith.subf %148, %152 : vector<8x512xf32>
    %154 = arith.addf %140, %153 : vector<8x512xf32>
    %c0_121 = arith.constant 0 : index
    %c0_122 = arith.constant 0 : index
    %c11 = arith.constant 11 : index
    %155 = vector.load %arg2[%c0_121, %c0_122, %c11] : memref<1x8x32xf32, #tpu.memory_space<vmem>>, vector<1x8x1xf32>
    %156 = vector.shape_cast %155 : vector<1x8x1xf32> to vector<8x1xf32>
    %c0_123 = arith.constant 0 : index
    %c0_124 = arith.constant 0 : index
    %c11_125 = arith.constant 11 : index
    %157 = vector.load %arg3[%c0_123, %c0_124, %c11_125] : memref<1x8x32xf32, #tpu.memory_space<vmem>>, vector<1x8x1xf32>
    %158 = vector.shape_cast %157 : vector<1x8x1xf32> to vector<8x1xf32>
    %c11_126 = arith.constant 11 : index
    %c0_127 = arith.constant 0 : index
    %c0_128 = arith.constant 0 : index
    %159 = vector.load %arg4[%c11_126, %c0_127, %c0_128] : memref<32x8x512xf32, #tpu.memory_space<vmem>>, vector<1x8x512xf32>
    %160 = vector.shape_cast %159 : vector<1x8x512xf32> to vector<8x512xf32>
    %161 = vector.broadcast %156 : vector<8x1xf32> to vector<8x512xf32>
    %162 = arith.mulf %161, %160 : vector<8x512xf32>
    %c11_129 = arith.constant 11 : index
    %c0_130 = arith.constant 0 : index
    %c0_131 = arith.constant 0 : index
    %163 = vector.load %arg5[%c11_129, %c0_130, %c0_131] : memref<32x8x512xf32, #tpu.memory_space<vmem>>, vector<1x8x512xf32>
    %164 = vector.shape_cast %163 : vector<1x8x512xf32> to vector<8x512xf32>
    %165 = vector.broadcast %158 : vector<8x1xf32> to vector<8x512xf32>
    %166 = arith.mulf %165, %164 : vector<8x512xf32>
    %167 = arith.subf %162, %166 : vector<8x512xf32>
    %168 = arith.addf %154, %167 : vector<8x512xf32>
    %c0_132 = arith.constant 0 : index
    %c0_133 = arith.constant 0 : index
    %c12 = arith.constant 12 : index
    %169 = vector.load %arg2[%c0_132, %c0_133, %c12] : memref<1x8x32xf32, #tpu.memory_space<vmem>>, vector<1x8x1xf32>
    %170 = vector.shape_cast %169 : vector<1x8x1xf32> to vector<8x1xf32>
    %c0_134 = arith.constant 0 : index
    %c0_135 = arith.constant 0 : index
    %c12_136 = arith.constant 12 : index
    %171 = vector.load %arg3[%c0_134, %c0_135, %c12_136] : memref<1x8x32xf32, #tpu.memory_space<vmem>>, vector<1x8x1xf32>
    %172 = vector.shape_cast %171 : vector<1x8x1xf32> to vector<8x1xf32>
    %c12_137 = arith.constant 12 : index
    %c0_138 = arith.constant 0 : index
    %c0_139 = arith.constant 0 : index
    %173 = vector.load %arg4[%c12_137, %c0_138, %c0_139] : memref<32x8x512xf32, #tpu.memory_space<vmem>>, vector<1x8x512xf32>
    %174 = vector.shape_cast %173 : vector<1x8x512xf32> to vector<8x512xf32>
    %175 = vector.broadcast %170 : vector<8x1xf32> to vector<8x512xf32>
    %176 = arith.mulf %175, %174 : vector<8x512xf32>
    %c12_140 = arith.constant 12 : index
    %c0_141 = arith.constant 0 : index
    %c0_142 = arith.constant 0 : index
    %177 = vector.load %arg5[%c12_140, %c0_141, %c0_142] : memref<32x8x512xf32, #tpu.memory_space<vmem>>, vector<1x8x512xf32>
    %178 = vector.shape_cast %177 : vector<1x8x512xf32> to vector<8x512xf32>
    %179 = vector.broadcast %172 : vector<8x1xf32> to vector<8x512xf32>
    %180 = arith.mulf %179, %178 : vector<8x512xf32>
    %181 = arith.subf %176, %180 : vector<8x512xf32>
    %182 = arith.addf %168, %181 : vector<8x512xf32>
    %c0_143 = arith.constant 0 : index
    %c0_144 = arith.constant 0 : index
    %c13 = arith.constant 13 : index
    %183 = vector.load %arg2[%c0_143, %c0_144, %c13] : memref<1x8x32xf32, #tpu.memory_space<vmem>>, vector<1x8x1xf32>
    %184 = vector.shape_cast %183 : vector<1x8x1xf32> to vector<8x1xf32>
    %c0_145 = arith.constant 0 : index
    %c0_146 = arith.constant 0 : index
    %c13_147 = arith.constant 13 : index
    %185 = vector.load %arg3[%c0_145, %c0_146, %c13_147] : memref<1x8x32xf32, #tpu.memory_space<vmem>>, vector<1x8x1xf32>
    %186 = vector.shape_cast %185 : vector<1x8x1xf32> to vector<8x1xf32>
    %c13_148 = arith.constant 13 : index
    %c0_149 = arith.constant 0 : index
    %c0_150 = arith.constant 0 : index
    %187 = vector.load %arg4[%c13_148, %c0_149, %c0_150] : memref<32x8x512xf32, #tpu.memory_space<vmem>>, vector<1x8x512xf32>
    %188 = vector.shape_cast %187 : vector<1x8x512xf32> to vector<8x512xf32>
    %189 = vector.broadcast %184 : vector<8x1xf32> to vector<8x512xf32>
    %190 = arith.mulf %189, %188 : vector<8x512xf32>
    %c13_151 = arith.constant 13 : index
    %c0_152 = arith.constant 0 : index
    %c0_153 = arith.constant 0 : index
    %191 = vector.load %arg5[%c13_151, %c0_152, %c0_153] : memref<32x8x512xf32, #tpu.memory_space<vmem>>, vector<1x8x512xf32>
    %192 = vector.shape_cast %191 : vector<1x8x512xf32> to vector<8x512xf32>
    %193 = vector.broadcast %186 : vector<8x1xf32> to vector<8x512xf32>
    %194 = arith.mulf %193, %192 : vector<8x512xf32>
    %195 = arith.subf %190, %194 : vector<8x512xf32>
    %196 = arith.addf %182, %195 : vector<8x512xf32>
    %c0_154 = arith.constant 0 : index
    %c0_155 = arith.constant 0 : index
    %c14 = arith.constant 14 : index
    %197 = vector.load %arg2[%c0_154, %c0_155, %c14] : memref<1x8x32xf32, #tpu.memory_space<vmem>>, vector<1x8x1xf32>
    %198 = vector.shape_cast %197 : vector<1x8x1xf32> to vector<8x1xf32>
    %c0_156 = arith.constant 0 : index
    %c0_157 = arith.constant 0 : index
    %c14_158 = arith.constant 14 : index
    %199 = vector.load %arg3[%c0_156, %c0_157, %c14_158] : memref<1x8x32xf32, #tpu.memory_space<vmem>>, vector<1x8x1xf32>
    %200 = vector.shape_cast %199 : vector<1x8x1xf32> to vector<8x1xf32>
    %c14_159 = arith.constant 14 : index
    %c0_160 = arith.constant 0 : index
    %c0_161 = arith.constant 0 : index
    %201 = vector.load %arg4[%c14_159, %c0_160, %c0_161] : memref<32x8x512xf32, #tpu.memory_space<vmem>>, vector<1x8x512xf32>
    %202 = vector.shape_cast %201 : vector<1x8x512xf32> to vector<8x512xf32>
    %203 = vector.broadcast %198 : vector<8x1xf32> to vector<8x512xf32>
    %204 = arith.mulf %203, %202 : vector<8x512xf32>
    %c14_162 = arith.constant 14 : index
    %c0_163 = arith.constant 0 : index
    %c0_164 = arith.constant 0 : index
    %205 = vector.load %arg5[%c14_162, %c0_163, %c0_164] : memref<32x8x512xf32, #tpu.memory_space<vmem>>, vector<1x8x512xf32>
    %206 = vector.shape_cast %205 : vector<1x8x512xf32> to vector<8x512xf32>
    %207 = vector.broadcast %200 : vector<8x1xf32> to vector<8x512xf32>
    %208 = arith.mulf %207, %206 : vector<8x512xf32>
    %209 = arith.subf %204, %208 : vector<8x512xf32>
    %210 = arith.addf %196, %209 : vector<8x512xf32>
    %c0_165 = arith.constant 0 : index
    %c0_166 = arith.constant 0 : index
    %c15 = arith.constant 15 : index
    %211 = vector.load %arg2[%c0_165, %c0_166, %c15] : memref<1x8x32xf32, #tpu.memory_space<vmem>>, vector<1x8x1xf32>
    %212 = vector.shape_cast %211 : vector<1x8x1xf32> to vector<8x1xf32>
    %c0_167 = arith.constant 0 : index
    %c0_168 = arith.constant 0 : index
    %c15_169 = arith.constant 15 : index
    %213 = vector.load %arg3[%c0_167, %c0_168, %c15_169] : memref<1x8x32xf32, #tpu.memory_space<vmem>>, vector<1x8x1xf32>
    %214 = vector.shape_cast %213 : vector<1x8x1xf32> to vector<8x1xf32>
    %c15_170 = arith.constant 15 : index
    %c0_171 = arith.constant 0 : index
    %c0_172 = arith.constant 0 : index
    %215 = vector.load %arg4[%c15_170, %c0_171, %c0_172] : memref<32x8x512xf32, #tpu.memory_space<vmem>>, vector<1x8x512xf32>
    %216 = vector.shape_cast %215 : vector<1x8x512xf32> to vector<8x512xf32>
    %217 = vector.broadcast %212 : vector<8x1xf32> to vector<8x512xf32>
    %218 = arith.mulf %217, %216 : vector<8x512xf32>
    %c15_173 = arith.constant 15 : index
    %c0_174 = arith.constant 0 : index
    %c0_175 = arith.constant 0 : index
    %219 = vector.load %arg5[%c15_173, %c0_174, %c0_175] : memref<32x8x512xf32, #tpu.memory_space<vmem>>, vector<1x8x512xf32>
    %220 = vector.shape_cast %219 : vector<1x8x512xf32> to vector<8x512xf32>
    %221 = vector.broadcast %214 : vector<8x1xf32> to vector<8x512xf32>
    %222 = arith.mulf %221, %220 : vector<8x512xf32>
    %223 = arith.subf %218, %222 : vector<8x512xf32>
    %224 = arith.addf %210, %223 : vector<8x512xf32>
    %c0_176 = arith.constant 0 : index
    %c0_177 = arith.constant 0 : index
    %c16 = arith.constant 16 : index
    %225 = vector.load %arg2[%c0_176, %c0_177, %c16] : memref<1x8x32xf32, #tpu.memory_space<vmem>>, vector<1x8x1xf32>
    %226 = vector.shape_cast %225 : vector<1x8x1xf32> to vector<8x1xf32>
    %c0_178 = arith.constant 0 : index
    %c0_179 = arith.constant 0 : index
    %c16_180 = arith.constant 16 : index
    %227 = vector.load %arg3[%c0_178, %c0_179, %c16_180] : memref<1x8x32xf32, #tpu.memory_space<vmem>>, vector<1x8x1xf32>
    %228 = vector.shape_cast %227 : vector<1x8x1xf32> to vector<8x1xf32>
    %c16_181 = arith.constant 16 : index
    %c0_182 = arith.constant 0 : index
    %c0_183 = arith.constant 0 : index
    %229 = vector.load %arg4[%c16_181, %c0_182, %c0_183] : memref<32x8x512xf32, #tpu.memory_space<vmem>>, vector<1x8x512xf32>
    %230 = vector.shape_cast %229 : vector<1x8x512xf32> to vector<8x512xf32>
    %231 = vector.broadcast %226 : vector<8x1xf32> to vector<8x512xf32>
    %232 = arith.mulf %231, %230 : vector<8x512xf32>
    %c16_184 = arith.constant 16 : index
    %c0_185 = arith.constant 0 : index
    %c0_186 = arith.constant 0 : index
    %233 = vector.load %arg5[%c16_184, %c0_185, %c0_186] : memref<32x8x512xf32, #tpu.memory_space<vmem>>, vector<1x8x512xf32>
    %234 = vector.shape_cast %233 : vector<1x8x512xf32> to vector<8x512xf32>
    %235 = vector.broadcast %228 : vector<8x1xf32> to vector<8x512xf32>
    %236 = arith.mulf %235, %234 : vector<8x512xf32>
    %237 = arith.subf %232, %236 : vector<8x512xf32>
    %238 = arith.addf %224, %237 : vector<8x512xf32>
    %c0_187 = arith.constant 0 : index
    %c0_188 = arith.constant 0 : index
    %c17 = arith.constant 17 : index
    %239 = vector.load %arg2[%c0_187, %c0_188, %c17] : memref<1x8x32xf32, #tpu.memory_space<vmem>>, vector<1x8x1xf32>
    %240 = vector.shape_cast %239 : vector<1x8x1xf32> to vector<8x1xf32>
    %c0_189 = arith.constant 0 : index
    %c0_190 = arith.constant 0 : index
    %c17_191 = arith.constant 17 : index
    %241 = vector.load %arg3[%c0_189, %c0_190, %c17_191] : memref<1x8x32xf32, #tpu.memory_space<vmem>>, vector<1x8x1xf32>
    %242 = vector.shape_cast %241 : vector<1x8x1xf32> to vector<8x1xf32>
    %c17_192 = arith.constant 17 : index
    %c0_193 = arith.constant 0 : index
    %c0_194 = arith.constant 0 : index
    %243 = vector.load %arg4[%c17_192, %c0_193, %c0_194] : memref<32x8x512xf32, #tpu.memory_space<vmem>>, vector<1x8x512xf32>
    %244 = vector.shape_cast %243 : vector<1x8x512xf32> to vector<8x512xf32>
    %245 = vector.broadcast %240 : vector<8x1xf32> to vector<8x512xf32>
    %246 = arith.mulf %245, %244 : vector<8x512xf32>
    %c17_195 = arith.constant 17 : index
    %c0_196 = arith.constant 0 : index
    %c0_197 = arith.constant 0 : index
    %247 = vector.load %arg5[%c17_195, %c0_196, %c0_197] : memref<32x8x512xf32, #tpu.memory_space<vmem>>, vector<1x8x512xf32>
    %248 = vector.shape_cast %247 : vector<1x8x512xf32> to vector<8x512xf32>
    %249 = vector.broadcast %242 : vector<8x1xf32> to vector<8x512xf32>
    %250 = arith.mulf %249, %248 : vector<8x512xf32>
    %251 = arith.subf %246, %250 : vector<8x512xf32>
    %252 = arith.addf %238, %251 : vector<8x512xf32>
    %c0_198 = arith.constant 0 : index
    %c0_199 = arith.constant 0 : index
    %c18 = arith.constant 18 : index
    %253 = vector.load %arg2[%c0_198, %c0_199, %c18] : memref<1x8x32xf32, #tpu.memory_space<vmem>>, vector<1x8x1xf32>
    %254 = vector.shape_cast %253 : vector<1x8x1xf32> to vector<8x1xf32>
    %c0_200 = arith.constant 0 : index
    %c0_201 = arith.constant 0 : index
    %c18_202 = arith.constant 18 : index
    %255 = vector.load %arg3[%c0_200, %c0_201, %c18_202] : memref<1x8x32xf32, #tpu.memory_space<vmem>>, vector<1x8x1xf32>
    %256 = vector.shape_cast %255 : vector<1x8x1xf32> to vector<8x1xf32>
    %c18_203 = arith.constant 18 : index
    %c0_204 = arith.constant 0 : index
    %c0_205 = arith.constant 0 : index
    %257 = vector.load %arg4[%c18_203, %c0_204, %c0_205] : memref<32x8x512xf32, #tpu.memory_space<vmem>>, vector<1x8x512xf32>
    %258 = vector.shape_cast %257 : vector<1x8x512xf32> to vector<8x512xf32>
    %259 = vector.broadcast %254 : vector<8x1xf32> to vector<8x512xf32>
    %260 = arith.mulf %259, %258 : vector<8x512xf32>
    %c18_206 = arith.constant 18 : index
    %c0_207 = arith.constant 0 : index
    %c0_208 = arith.constant 0 : index
    %261 = vector.load %arg5[%c18_206, %c0_207, %c0_208] : memref<32x8x512xf32, #tpu.memory_space<vmem>>, vector<1x8x512xf32>
    %262 = vector.shape_cast %261 : vector<1x8x512xf32> to vector<8x512xf32>
    %263 = vector.broadcast %256 : vector<8x1xf32> to vector<8x512xf32>
    %264 = arith.mulf %263, %262 : vector<8x512xf32>
    %265 = arith.subf %260, %264 : vector<8x512xf32>
    %266 = arith.addf %252, %265 : vector<8x512xf32>
    %c0_209 = arith.constant 0 : index
    %c0_210 = arith.constant 0 : index
    %c19 = arith.constant 19 : index
    %267 = vector.load %arg2[%c0_209, %c0_210, %c19] : memref<1x8x32xf32, #tpu.memory_space<vmem>>, vector<1x8x1xf32>
    %268 = vector.shape_cast %267 : vector<1x8x1xf32> to vector<8x1xf32>
    %c0_211 = arith.constant 0 : index
    %c0_212 = arith.constant 0 : index
    %c19_213 = arith.constant 19 : index
    %269 = vector.load %arg3[%c0_211, %c0_212, %c19_213] : memref<1x8x32xf32, #tpu.memory_space<vmem>>, vector<1x8x1xf32>
    %270 = vector.shape_cast %269 : vector<1x8x1xf32> to vector<8x1xf32>
    %c19_214 = arith.constant 19 : index
    %c0_215 = arith.constant 0 : index
    %c0_216 = arith.constant 0 : index
    %271 = vector.load %arg4[%c19_214, %c0_215, %c0_216] : memref<32x8x512xf32, #tpu.memory_space<vmem>>, vector<1x8x512xf32>
    %272 = vector.shape_cast %271 : vector<1x8x512xf32> to vector<8x512xf32>
    %273 = vector.broadcast %268 : vector<8x1xf32> to vector<8x512xf32>
    %274 = arith.mulf %273, %272 : vector<8x512xf32>
    %c19_217 = arith.constant 19 : index
    %c0_218 = arith.constant 0 : index
    %c0_219 = arith.constant 0 : index
    %275 = vector.load %arg5[%c19_217, %c0_218, %c0_219] : memref<32x8x512xf32, #tpu.memory_space<vmem>>, vector<1x8x512xf32>
    %276 = vector.shape_cast %275 : vector<1x8x512xf32> to vector<8x512xf32>
    %277 = vector.broadcast %270 : vector<8x1xf32> to vector<8x512xf32>
    %278 = arith.mulf %277, %276 : vector<8x512xf32>
    %279 = arith.subf %274, %278 : vector<8x512xf32>
    %280 = arith.addf %266, %279 : vector<8x512xf32>
    %c0_220 = arith.constant 0 : index
    %c0_221 = arith.constant 0 : index
    %c20 = arith.constant 20 : index
    %281 = vector.load %arg2[%c0_220, %c0_221, %c20] : memref<1x8x32xf32, #tpu.memory_space<vmem>>, vector<1x8x1xf32>
    %282 = vector.shape_cast %281 : vector<1x8x1xf32> to vector<8x1xf32>
    %c0_222 = arith.constant 0 : index
    %c0_223 = arith.constant 0 : index
    %c20_224 = arith.constant 20 : index
    %283 = vector.load %arg3[%c0_222, %c0_223, %c20_224] : memref<1x8x32xf32, #tpu.memory_space<vmem>>, vector<1x8x1xf32>
    %284 = vector.shape_cast %283 : vector<1x8x1xf32> to vector<8x1xf32>
    %c20_225 = arith.constant 20 : index
    %c0_226 = arith.constant 0 : index
    %c0_227 = arith.constant 0 : index
    %285 = vector.load %arg4[%c20_225, %c0_226, %c0_227] : memref<32x8x512xf32, #tpu.memory_space<vmem>>, vector<1x8x512xf32>
    %286 = vector.shape_cast %285 : vector<1x8x512xf32> to vector<8x512xf32>
    %287 = vector.broadcast %282 : vector<8x1xf32> to vector<8x512xf32>
    %288 = arith.mulf %287, %286 : vector<8x512xf32>
    %c20_228 = arith.constant 20 : index
    %c0_229 = arith.constant 0 : index
    %c0_230 = arith.constant 0 : index
    %289 = vector.load %arg5[%c20_228, %c0_229, %c0_230] : memref<32x8x512xf32, #tpu.memory_space<vmem>>, vector<1x8x512xf32>
    %290 = vector.shape_cast %289 : vector<1x8x512xf32> to vector<8x512xf32>
    %291 = vector.broadcast %284 : vector<8x1xf32> to vector<8x512xf32>
    %292 = arith.mulf %291, %290 : vector<8x512xf32>
    %293 = arith.subf %288, %292 : vector<8x512xf32>
    %294 = arith.addf %280, %293 : vector<8x512xf32>
    %c0_231 = arith.constant 0 : index
    %c0_232 = arith.constant 0 : index
    %c21 = arith.constant 21 : index
    %295 = vector.load %arg2[%c0_231, %c0_232, %c21] : memref<1x8x32xf32, #tpu.memory_space<vmem>>, vector<1x8x1xf32>
    %296 = vector.shape_cast %295 : vector<1x8x1xf32> to vector<8x1xf32>
    %c0_233 = arith.constant 0 : index
    %c0_234 = arith.constant 0 : index
    %c21_235 = arith.constant 21 : index
    %297 = vector.load %arg3[%c0_233, %c0_234, %c21_235] : memref<1x8x32xf32, #tpu.memory_space<vmem>>, vector<1x8x1xf32>
    %298 = vector.shape_cast %297 : vector<1x8x1xf32> to vector<8x1xf32>
    %c21_236 = arith.constant 21 : index
    %c0_237 = arith.constant 0 : index
    %c0_238 = arith.constant 0 : index
    %299 = vector.load %arg4[%c21_236, %c0_237, %c0_238] : memref<32x8x512xf32, #tpu.memory_space<vmem>>, vector<1x8x512xf32>
    %300 = vector.shape_cast %299 : vector<1x8x512xf32> to vector<8x512xf32>
    %301 = vector.broadcast %296 : vector<8x1xf32> to vector<8x512xf32>
    %302 = arith.mulf %301, %300 : vector<8x512xf32>
    %c21_239 = arith.constant 21 : index
    %c0_240 = arith.constant 0 : index
    %c0_241 = arith.constant 0 : index
    %303 = vector.load %arg5[%c21_239, %c0_240, %c0_241] : memref<32x8x512xf32, #tpu.memory_space<vmem>>, vector<1x8x512xf32>
    %304 = vector.shape_cast %303 : vector<1x8x512xf32> to vector<8x512xf32>
    %305 = vector.broadcast %298 : vector<8x1xf32> to vector<8x512xf32>
    %306 = arith.mulf %305, %304 : vector<8x512xf32>
    %307 = arith.subf %302, %306 : vector<8x512xf32>
    %308 = arith.addf %294, %307 : vector<8x512xf32>
    %c0_242 = arith.constant 0 : index
    %c0_243 = arith.constant 0 : index
    %c22 = arith.constant 22 : index
    %309 = vector.load %arg2[%c0_242, %c0_243, %c22] : memref<1x8x32xf32, #tpu.memory_space<vmem>>, vector<1x8x1xf32>
    %310 = vector.shape_cast %309 : vector<1x8x1xf32> to vector<8x1xf32>
    %c0_244 = arith.constant 0 : index
    %c0_245 = arith.constant 0 : index
    %c22_246 = arith.constant 22 : index
    %311 = vector.load %arg3[%c0_244, %c0_245, %c22_246] : memref<1x8x32xf32, #tpu.memory_space<vmem>>, vector<1x8x1xf32>
    %312 = vector.shape_cast %311 : vector<1x8x1xf32> to vector<8x1xf32>
    %c22_247 = arith.constant 22 : index
    %c0_248 = arith.constant 0 : index
    %c0_249 = arith.constant 0 : index
    %313 = vector.load %arg4[%c22_247, %c0_248, %c0_249] : memref<32x8x512xf32, #tpu.memory_space<vmem>>, vector<1x8x512xf32>
    %314 = vector.shape_cast %313 : vector<1x8x512xf32> to vector<8x512xf32>
    %315 = vector.broadcast %310 : vector<8x1xf32> to vector<8x512xf32>
    %316 = arith.mulf %315, %314 : vector<8x512xf32>
    %c22_250 = arith.constant 22 : index
    %c0_251 = arith.constant 0 : index
    %c0_252 = arith.constant 0 : index
    %317 = vector.load %arg5[%c22_250, %c0_251, %c0_252] : memref<32x8x512xf32, #tpu.memory_space<vmem>>, vector<1x8x512xf32>
    %318 = vector.shape_cast %317 : vector<1x8x512xf32> to vector<8x512xf32>
    %319 = vector.broadcast %312 : vector<8x1xf32> to vector<8x512xf32>
    %320 = arith.mulf %319, %318 : vector<8x512xf32>
    %321 = arith.subf %316, %320 : vector<8x512xf32>
    %322 = arith.addf %308, %321 : vector<8x512xf32>
    %c0_253 = arith.constant 0 : index
    %c0_254 = arith.constant 0 : index
    %c23 = arith.constant 23 : index
    %323 = vector.load %arg2[%c0_253, %c0_254, %c23] : memref<1x8x32xf32, #tpu.memory_space<vmem>>, vector<1x8x1xf32>
    %324 = vector.shape_cast %323 : vector<1x8x1xf32> to vector<8x1xf32>
    %c0_255 = arith.constant 0 : index
    %c0_256 = arith.constant 0 : index
    %c23_257 = arith.constant 23 : index
    %325 = vector.load %arg3[%c0_255, %c0_256, %c23_257] : memref<1x8x32xf32, #tpu.memory_space<vmem>>, vector<1x8x1xf32>
    %326 = vector.shape_cast %325 : vector<1x8x1xf32> to vector<8x1xf32>
    %c23_258 = arith.constant 23 : index
    %c0_259 = arith.constant 0 : index
    %c0_260 = arith.constant 0 : index
    %327 = vector.load %arg4[%c23_258, %c0_259, %c0_260] : memref<32x8x512xf32, #tpu.memory_space<vmem>>, vector<1x8x512xf32>
    %328 = vector.shape_cast %327 : vector<1x8x512xf32> to vector<8x512xf32>
    %329 = vector.broadcast %324 : vector<8x1xf32> to vector<8x512xf32>
    %330 = arith.mulf %329, %328 : vector<8x512xf32>
    %c23_261 = arith.constant 23 : index
    %c0_262 = arith.constant 0 : index
    %c0_263 = arith.constant 0 : index
    %331 = vector.load %arg5[%c23_261, %c0_262, %c0_263] : memref<32x8x512xf32, #tpu.memory_space<vmem>>, vector<1x8x512xf32>
    %332 = vector.shape_cast %331 : vector<1x8x512xf32> to vector<8x512xf32>
    %333 = vector.broadcast %326 : vector<8x1xf32> to vector<8x512xf32>
    %334 = arith.mulf %333, %332 : vector<8x512xf32>
    %335 = arith.subf %330, %334 : vector<8x512xf32>
    %336 = arith.addf %322, %335 : vector<8x512xf32>
    %c0_264 = arith.constant 0 : index
    %c0_265 = arith.constant 0 : index
    %c24 = arith.constant 24 : index
    %337 = vector.load %arg2[%c0_264, %c0_265, %c24] : memref<1x8x32xf32, #tpu.memory_space<vmem>>, vector<1x8x1xf32>
    %338 = vector.shape_cast %337 : vector<1x8x1xf32> to vector<8x1xf32>
    %c0_266 = arith.constant 0 : index
    %c0_267 = arith.constant 0 : index
    %c24_268 = arith.constant 24 : index
    %339 = vector.load %arg3[%c0_266, %c0_267, %c24_268] : memref<1x8x32xf32, #tpu.memory_space<vmem>>, vector<1x8x1xf32>
    %340 = vector.shape_cast %339 : vector<1x8x1xf32> to vector<8x1xf32>
    %c24_269 = arith.constant 24 : index
    %c0_270 = arith.constant 0 : index
    %c0_271 = arith.constant 0 : index
    %341 = vector.load %arg4[%c24_269, %c0_270, %c0_271] : memref<32x8x512xf32, #tpu.memory_space<vmem>>, vector<1x8x512xf32>
    %342 = vector.shape_cast %341 : vector<1x8x512xf32> to vector<8x512xf32>
    %343 = vector.broadcast %338 : vector<8x1xf32> to vector<8x512xf32>
    %344 = arith.mulf %343, %342 : vector<8x512xf32>
    %c24_272 = arith.constant 24 : index
    %c0_273 = arith.constant 0 : index
    %c0_274 = arith.constant 0 : index
    %345 = vector.load %arg5[%c24_272, %c0_273, %c0_274] : memref<32x8x512xf32, #tpu.memory_space<vmem>>, vector<1x8x512xf32>
    %346 = vector.shape_cast %345 : vector<1x8x512xf32> to vector<8x512xf32>
    %347 = vector.broadcast %340 : vector<8x1xf32> to vector<8x512xf32>
    %348 = arith.mulf %347, %346 : vector<8x512xf32>
    %349 = arith.subf %344, %348 : vector<8x512xf32>
    %350 = arith.addf %336, %349 : vector<8x512xf32>
    %c0_275 = arith.constant 0 : index
    %c0_276 = arith.constant 0 : index
    %c25 = arith.constant 25 : index
    %351 = vector.load %arg2[%c0_275, %c0_276, %c25] : memref<1x8x32xf32, #tpu.memory_space<vmem>>, vector<1x8x1xf32>
    %352 = vector.shape_cast %351 : vector<1x8x1xf32> to vector<8x1xf32>
    %c0_277 = arith.constant 0 : index
    %c0_278 = arith.constant 0 : index
    %c25_279 = arith.constant 25 : index
    %353 = vector.load %arg3[%c0_277, %c0_278, %c25_279] : memref<1x8x32xf32, #tpu.memory_space<vmem>>, vector<1x8x1xf32>
    %354 = vector.shape_cast %353 : vector<1x8x1xf32> to vector<8x1xf32>
    %c25_280 = arith.constant 25 : index
    %c0_281 = arith.constant 0 : index
    %c0_282 = arith.constant 0 : index
    %355 = vector.load %arg4[%c25_280, %c0_281, %c0_282] : memref<32x8x512xf32, #tpu.memory_space<vmem>>, vector<1x8x512xf32>
    %356 = vector.shape_cast %355 : vector<1x8x512xf32> to vector<8x512xf32>
    %357 = vector.broadcast %352 : vector<8x1xf32> to vector<8x512xf32>
    %358 = arith.mulf %357, %356 : vector<8x512xf32>
    %c25_283 = arith.constant 25 : index
    %c0_284 = arith.constant 0 : index
    %c0_285 = arith.constant 0 : index
    %359 = vector.load %arg5[%c25_283, %c0_284, %c0_285] : memref<32x8x512xf32, #tpu.memory_space<vmem>>, vector<1x8x512xf32>
    %360 = vector.shape_cast %359 : vector<1x8x512xf32> to vector<8x512xf32>
    %361 = vector.broadcast %354 : vector<8x1xf32> to vector<8x512xf32>
    %362 = arith.mulf %361, %360 : vector<8x512xf32>
    %363 = arith.subf %358, %362 : vector<8x512xf32>
    %364 = arith.addf %350, %363 : vector<8x512xf32>
    %c0_286 = arith.constant 0 : index
    %c0_287 = arith.constant 0 : index
    %c26 = arith.constant 26 : index
    %365 = vector.load %arg2[%c0_286, %c0_287, %c26] : memref<1x8x32xf32, #tpu.memory_space<vmem>>, vector<1x8x1xf32>
    %366 = vector.shape_cast %365 : vector<1x8x1xf32> to vector<8x1xf32>
    %c0_288 = arith.constant 0 : index
    %c0_289 = arith.constant 0 : index
    %c26_290 = arith.constant 26 : index
    %367 = vector.load %arg3[%c0_288, %c0_289, %c26_290] : memref<1x8x32xf32, #tpu.memory_space<vmem>>, vector<1x8x1xf32>
    %368 = vector.shape_cast %367 : vector<1x8x1xf32> to vector<8x1xf32>
    %c26_291 = arith.constant 26 : index
    %c0_292 = arith.constant 0 : index
    %c0_293 = arith.constant 0 : index
    %369 = vector.load %arg4[%c26_291, %c0_292, %c0_293] : memref<32x8x512xf32, #tpu.memory_space<vmem>>, vector<1x8x512xf32>
    %370 = vector.shape_cast %369 : vector<1x8x512xf32> to vector<8x512xf32>
    %371 = vector.broadcast %366 : vector<8x1xf32> to vector<8x512xf32>
    %372 = arith.mulf %371, %370 : vector<8x512xf32>
    %c26_294 = arith.constant 26 : index
    %c0_295 = arith.constant 0 : index
    %c0_296 = arith.constant 0 : index
    %373 = vector.load %arg5[%c26_294, %c0_295, %c0_296] : memref<32x8x512xf32, #tpu.memory_space<vmem>>, vector<1x8x512xf32>
    %374 = vector.shape_cast %373 : vector<1x8x512xf32> to vector<8x512xf32>
    %375 = vector.broadcast %368 : vector<8x1xf32> to vector<8x512xf32>
    %376 = arith.mulf %375, %374 : vector<8x512xf32>
    %377 = arith.subf %372, %376 : vector<8x512xf32>
    %378 = arith.addf %364, %377 : vector<8x512xf32>
    %c0_297 = arith.constant 0 : index
    %c0_298 = arith.constant 0 : index
    %c27 = arith.constant 27 : index
    %379 = vector.load %arg2[%c0_297, %c0_298, %c27] : memref<1x8x32xf32, #tpu.memory_space<vmem>>, vector<1x8x1xf32>
    %380 = vector.shape_cast %379 : vector<1x8x1xf32> to vector<8x1xf32>
    %c0_299 = arith.constant 0 : index
    %c0_300 = arith.constant 0 : index
    %c27_301 = arith.constant 27 : index
    %381 = vector.load %arg3[%c0_299, %c0_300, %c27_301] : memref<1x8x32xf32, #tpu.memory_space<vmem>>, vector<1x8x1xf32>
    %382 = vector.shape_cast %381 : vector<1x8x1xf32> to vector<8x1xf32>
    %c27_302 = arith.constant 27 : index
    %c0_303 = arith.constant 0 : index
    %c0_304 = arith.constant 0 : index
    %383 = vector.load %arg4[%c27_302, %c0_303, %c0_304] : memref<32x8x512xf32, #tpu.memory_space<vmem>>, vector<1x8x512xf32>
    %384 = vector.shape_cast %383 : vector<1x8x512xf32> to vector<8x512xf32>
    %385 = vector.broadcast %380 : vector<8x1xf32> to vector<8x512xf32>
    %386 = arith.mulf %385, %384 : vector<8x512xf32>
    %c27_305 = arith.constant 27 : index
    %c0_306 = arith.constant 0 : index
    %c0_307 = arith.constant 0 : index
    %387 = vector.load %arg5[%c27_305, %c0_306, %c0_307] : memref<32x8x512xf32, #tpu.memory_space<vmem>>, vector<1x8x512xf32>
    %388 = vector.shape_cast %387 : vector<1x8x512xf32> to vector<8x512xf32>
    %389 = vector.broadcast %382 : vector<8x1xf32> to vector<8x512xf32>
    %390 = arith.mulf %389, %388 : vector<8x512xf32>
    %391 = arith.subf %386, %390 : vector<8x512xf32>
    %392 = arith.addf %378, %391 : vector<8x512xf32>
    %c0_308 = arith.constant 0 : index
    %c0_309 = arith.constant 0 : index
    %c28 = arith.constant 28 : index
    %393 = vector.load %arg2[%c0_308, %c0_309, %c28] : memref<1x8x32xf32, #tpu.memory_space<vmem>>, vector<1x8x1xf32>
    %394 = vector.shape_cast %393 : vector<1x8x1xf32> to vector<8x1xf32>
    %c0_310 = arith.constant 0 : index
    %c0_311 = arith.constant 0 : index
    %c28_312 = arith.constant 28 : index
    %395 = vector.load %arg3[%c0_310, %c0_311, %c28_312] : memref<1x8x32xf32, #tpu.memory_space<vmem>>, vector<1x8x1xf32>
    %396 = vector.shape_cast %395 : vector<1x8x1xf32> to vector<8x1xf32>
    %c28_313 = arith.constant 28 : index
    %c0_314 = arith.constant 0 : index
    %c0_315 = arith.constant 0 : index
    %397 = vector.load %arg4[%c28_313, %c0_314, %c0_315] : memref<32x8x512xf32, #tpu.memory_space<vmem>>, vector<1x8x512xf32>
    %398 = vector.shape_cast %397 : vector<1x8x512xf32> to vector<8x512xf32>
    %399 = vector.broadcast %394 : vector<8x1xf32> to vector<8x512xf32>
    %400 = arith.mulf %399, %398 : vector<8x512xf32>
    %c28_316 = arith.constant 28 : index
    %c0_317 = arith.constant 0 : index
    %c0_318 = arith.constant 0 : index
    %401 = vector.load %arg5[%c28_316, %c0_317, %c0_318] : memref<32x8x512xf32, #tpu.memory_space<vmem>>, vector<1x8x512xf32>
    %402 = vector.shape_cast %401 : vector<1x8x512xf32> to vector<8x512xf32>
    %403 = vector.broadcast %396 : vector<8x1xf32> to vector<8x512xf32>
    %404 = arith.mulf %403, %402 : vector<8x512xf32>
    %405 = arith.subf %400, %404 : vector<8x512xf32>
    %406 = arith.addf %392, %405 : vector<8x512xf32>
    %c0_319 = arith.constant 0 : index
    %c0_320 = arith.constant 0 : index
    %c29 = arith.constant 29 : index
    %407 = vector.load %arg2[%c0_319, %c0_320, %c29] : memref<1x8x32xf32, #tpu.memory_space<vmem>>, vector<1x8x1xf32>
    %408 = vector.shape_cast %407 : vector<1x8x1xf32> to vector<8x1xf32>
    %c0_321 = arith.constant 0 : index
    %c0_322 = arith.constant 0 : index
    %c29_323 = arith.constant 29 : index
    %409 = vector.load %arg3[%c0_321, %c0_322, %c29_323] : memref<1x8x32xf32, #tpu.memory_space<vmem>>, vector<1x8x1xf32>
    %410 = vector.shape_cast %409 : vector<1x8x1xf32> to vector<8x1xf32>
    %c29_324 = arith.constant 29 : index
    %c0_325 = arith.constant 0 : index
    %c0_326 = arith.constant 0 : index
    %411 = vector.load %arg4[%c29_324, %c0_325, %c0_326] : memref<32x8x512xf32, #tpu.memory_space<vmem>>, vector<1x8x512xf32>
    %412 = vector.shape_cast %411 : vector<1x8x512xf32> to vector<8x512xf32>
    %413 = vector.broadcast %408 : vector<8x1xf32> to vector<8x512xf32>
    %414 = arith.mulf %413, %412 : vector<8x512xf32>
    %c29_327 = arith.constant 29 : index
    %c0_328 = arith.constant 0 : index
    %c0_329 = arith.constant 0 : index
    %415 = vector.load %arg5[%c29_327, %c0_328, %c0_329] : memref<32x8x512xf32, #tpu.memory_space<vmem>>, vector<1x8x512xf32>
    %416 = vector.shape_cast %415 : vector<1x8x512xf32> to vector<8x512xf32>
    %417 = vector.broadcast %410 : vector<8x1xf32> to vector<8x512xf32>
    %418 = arith.mulf %417, %416 : vector<8x512xf32>
    %419 = arith.subf %414, %418 : vector<8x512xf32>
    %420 = arith.addf %406, %419 : vector<8x512xf32>
    %c0_330 = arith.constant 0 : index
    %c0_331 = arith.constant 0 : index
    %c30 = arith.constant 30 : index
    %421 = vector.load %arg2[%c0_330, %c0_331, %c30] : memref<1x8x32xf32, #tpu.memory_space<vmem>>, vector<1x8x1xf32>
    %422 = vector.shape_cast %421 : vector<1x8x1xf32> to vector<8x1xf32>
    %c0_332 = arith.constant 0 : index
    %c0_333 = arith.constant 0 : index
    %c30_334 = arith.constant 30 : index
    %423 = vector.load %arg3[%c0_332, %c0_333, %c30_334] : memref<1x8x32xf32, #tpu.memory_space<vmem>>, vector<1x8x1xf32>
    %424 = vector.shape_cast %423 : vector<1x8x1xf32> to vector<8x1xf32>
    %c30_335 = arith.constant 30 : index
    %c0_336 = arith.constant 0 : index
    %c0_337 = arith.constant 0 : index
    %425 = vector.load %arg4[%c30_335, %c0_336, %c0_337] : memref<32x8x512xf32, #tpu.memory_space<vmem>>, vector<1x8x512xf32>
    %426 = vector.shape_cast %425 : vector<1x8x512xf32> to vector<8x512xf32>
    %427 = vector.broadcast %422 : vector<8x1xf32> to vector<8x512xf32>
    %428 = arith.mulf %427, %426 : vector<8x512xf32>
    %c30_338 = arith.constant 30 : index
    %c0_339 = arith.constant 0 : index
    %c0_340 = arith.constant 0 : index
    %429 = vector.load %arg5[%c30_338, %c0_339, %c0_340] : memref<32x8x512xf32, #tpu.memory_space<vmem>>, vector<1x8x512xf32>
    %430 = vector.shape_cast %429 : vector<1x8x512xf32> to vector<8x512xf32>
    %431 = vector.broadcast %424 : vector<8x1xf32> to vector<8x512xf32>
    %432 = arith.mulf %431, %430 : vector<8x512xf32>
    %433 = arith.subf %428, %432 : vector<8x512xf32>
    %434 = arith.addf %420, %433 : vector<8x512xf32>
    %c0_341 = arith.constant 0 : index
    %c0_342 = arith.constant 0 : index
    %c31 = arith.constant 31 : index
    %435 = vector.load %arg2[%c0_341, %c0_342, %c31] : memref<1x8x32xf32, #tpu.memory_space<vmem>>, vector<1x8x1xf32>
    %436 = vector.shape_cast %435 : vector<1x8x1xf32> to vector<8x1xf32>
    %c0_343 = arith.constant 0 : index
    %c0_344 = arith.constant 0 : index
    %c31_345 = arith.constant 31 : index
    %437 = vector.load %arg3[%c0_343, %c0_344, %c31_345] : memref<1x8x32xf32, #tpu.memory_space<vmem>>, vector<1x8x1xf32>
    %438 = vector.shape_cast %437 : vector<1x8x1xf32> to vector<8x1xf32>
    %c31_346 = arith.constant 31 : index
    %c0_347 = arith.constant 0 : index
    %c0_348 = arith.constant 0 : index
    %439 = vector.load %arg4[%c31_346, %c0_347, %c0_348] : memref<32x8x512xf32, #tpu.memory_space<vmem>>, vector<1x8x512xf32>
    %440 = vector.shape_cast %439 : vector<1x8x512xf32> to vector<8x512xf32>
    %441 = vector.broadcast %436 : vector<8x1xf32> to vector<8x512xf32>
    %442 = arith.mulf %441, %440 : vector<8x512xf32>
    %c31_349 = arith.constant 31 : index
    %c0_350 = arith.constant 0 : index
    %c0_351 = arith.constant 0 : index
    %443 = vector.load %arg5[%c31_349, %c0_350, %c0_351] : memref<32x8x512xf32, #tpu.memory_space<vmem>>, vector<1x8x512xf32>
    %444 = vector.shape_cast %443 : vector<1x8x512xf32> to vector<8x512xf32>
    %445 = vector.broadcast %438 : vector<8x1xf32> to vector<8x512xf32>
    %446 = arith.mulf %445, %444 : vector<8x512xf32>
    %447 = arith.subf %442, %446 : vector<8x512xf32>
    %448 = arith.addf %434, %447 : vector<8x512xf32>
    %c0_352 = arith.constant 0 : index
    %c0_353 = arith.constant 0 : index
    %449 = vector.load %arg6[%c0_352, %c0_353] : memref<8x512xf32, #tpu.memory_space<vmem>>, vector<8x512xf32>
    tpu.vector_store %arg6[%c0_352, %c0_353], %448 {strides = array<i32>} : memref<8x512xf32, #tpu.memory_space<vmem>>, vector<8x512xf32>,
    return
  }
  func.func @transform_0(%arg0: i32, %arg1: i32) -> (i32, i32, i32) {
    %c0_i32 = arith.constant 0 : i32
    %c0_i32_0 = arith.constant 0 : i32
    return %arg1, %arg0, %c0_i32 : i32, i32, i32
  }
  func.func @transform_1(%arg0: i32, %arg1: i32) -> (i32, i32, i32) {
    %c0_i32 = arith.constant 0 : i32
    %c0_i32_0 = arith.constant 0 : i32
    return %arg1, %arg0, %c0_i32 : i32, i32, i32
  }
  func.func @transform_2(%arg0: i32, %arg1: i32) -> (i32, i32, i32) {
    %c0_i32 = arith.constant 0 : i32
    %c0_i32_0 = arith.constant 0 : i32
    %c0_i32_1 = arith.constant 0 : i32
    return %c0_i32, %arg0, %c0_i32_0 : i32, i32, i32
  }
  func.func @transform_3(%arg0: i32, %arg1: i32) -> (i32, i32, i32) {
    %c0_i32 = arith.constant 0 : i32
    %c0_i32_0 = arith.constant 0 : i32
    %c0_i32_1 = arith.constant 0 : i32
    return %c0_i32, %arg0, %c0_i32_0 : i32, i32, i32
  }
  func.func @transform_4(%arg0: i32, %arg1: i32) -> (i32, i32) {
    %c0_i32 = arith.constant 0 : i32
    return %arg0, %arg1 : i32, i32
  }
}

</mosaic_0001>

<llo_original>
// kernel: sub.26
$region0: #{sub.26}
  #allocation0 [shape = 's32[1]{0}', space=sflag, size = 0x4, scoped, tag = 'scoped memory for sub.26']
  %s0 = inlined_call_operand.vmem [shape: f32[32,8,2], index: 0, kind: input, shape index: {}]
  %s1 = inlined_call_operand.vmem [shape: f32[32,8,2], index: 1, kind: input, shape index: {}]
  %s2 = inlined_call_operand.vmem [shape: f32[32,8,2], index: 2, kind: output, shape index: {}]
  %v3 = vld [vmem:[%s0] sm:$0xff]
  %v4 = vld [vmem:[%s1] sm:$0xff]
  %5 = xla_tuple %v3, %v4
  %6 = xla_tuple %5
  %v7 = vsub.f32 %v3, %v4
  %8 = xla_tuple %v7
  %9 = vst [vmem:[%s2] sm:$0xff] %v7
  %s10 = scalar_lea.vmem %s0, 8
  %v11 = vld [vmem:[%s10] sm:$0xff]
  %s12 = scalar_lea.vmem %s1, 8
  %v13 = vld [vmem:[%s12] sm:$0xff]
  %14 = xla_tuple %v11, %v13
  %15 = xla_tuple %14
  %v16 = vsub.f32 %v11, %v13
  %17 = xla_tuple %v16
  %s18 = scalar_lea.vmem %s2, 8
  %19 = vst [vmem:[%s18] sm:$0xff] %v16
  %s20 = scalar_lea.vmem %s0, 16
  %v21 = vld [vmem:[%s20] sm:$0xff]
  %s22 = scalar_lea.vmem %s1, 16
  %v23 = vld [vmem:[%s22] sm:$0xff]
  %24 = xla_tuple %v21, %v23
  %25 = xla_tuple %24
  %v26 = vsub.f32 %v21, %v23
  %27 = xla_tuple %v26
  %s28 = scalar_lea.vmem %s2, 16
  %29 = vst [vmem:[%s28] sm:$0xff] %v26
  %s30 = scalar_lea.vmem %s0, 24
  %v31 = vld [vmem:[%s30] sm:$0xff]
  %s32 = scalar_lea.vmem %s1, 24
  %v33 = vld [vmem:[%s32] sm:$0xff]
  %34 = xla_tuple %v31, %v33
  %35 = xla_tuple %34
  %v36 = vsub.f32 %v31, %v33
  %37 = xla_tuple %v36
  %s38 = scalar_lea.vmem %s2, 24
  %39 = vst [vmem:[%s38] sm:$0xff] %v36
  %s40 = scalar_lea.vmem %s0, 32
  %v41 = vld [vmem:[%s40] sm:$0xff]
  %s42 = scalar_lea.vmem %s1, 32
  %v43 = vld [vmem:[%s42] sm:$0xff]
  %44 = xla_tuple %v41, %v43
  %45 = xla_tuple %44
  %v46 = vsub.f32 %v41, %v43
  %47 = xla_tuple %v46
  %s48 = scalar_lea.vmem %s2, 32
  %49 = vst [vmem:[%s48] sm:$0xff] %v46
  %s50 = scalar_lea.vmem %s0, 40
  %v51 = vld [vmem:[%s50] sm:$0xff]
  %s52 = scalar_lea.vmem %s1, 40
  %v53 = vld [vmem:[%s52] sm:$0xff]
  %54 = xla_tuple %v51, %v53
  %55 = xla_tuple %54
  %v56 = vsub.f32 %v51, %v53
  %57 = xla_tuple %v56
  %s58 = scalar_lea.vmem %s2, 40
  %59 = vst [vmem:[%s58] sm:$0xff] %v56
  %s60 = scalar_lea.vmem %s0, 48
  %v61 = vld [vmem:[%s60] sm:$0xff]
  %s62 = scalar_lea.vmem %s1, 48
  %v63 = vld [vmem:[%s62] sm:$0xff]
  %64 = xla_tuple %v61, %v63
  %65 = xla_tuple %64
  %v66 = vsub.f32 %v61, %v63
  %67 = xla_tuple %v66
  %s68 = scalar_lea.vmem %s2, 48
  %69 = vst [vmem:[%s68] sm:$0xff] %v66
  %s70 = scalar_lea.vmem %s0, 56
  %v71 = vld [vmem:[%s70] sm:$0xff]
  %s72 = scalar_lea.vmem %s1, 56
  %v73 = vld [vmem:[%s72] sm:$0xff]
  %74 = xla_tuple %v71, %v73
  %75 = xla_tuple %74
  %v76 = vsub.f32 %v71, %v73
  %77 = xla_tuple %v76
  %s78 = scalar_lea.vmem %s2, 56
  %79 = vst [vmem:[%s78] sm:$0xff] %v76
  %s80 = scalar_lea.vmem %s0, 64
  %v81 = vld [vmem:[%s80] sm:$0xff]
  %s82 = scalar_lea.vmem %s1, 64
  %v83 = vld [vmem:[%s82] sm:$0xff]
  %84 = xla_tuple %v81, %v83
  %85 = xla_tuple %84
  %v86 = vsub.f32 %v81, %v83
  %87 = xla_tuple %v86
  %s88 = scalar_lea.vmem %s2, 64
  %89 = vst [vmem:[%s88] sm:$0xff] %v86
  %s90 = scalar_lea.vmem %s0, 72
  %v91 = vld [vmem:[%s90] sm:$0xff]
  %s92 = scalar_lea.vmem %s1, 72
  %v93 = vld [vmem:[%s92] sm:$0xff]
  %94 = xla_tuple %v91, %v93
  %95 = xla_tuple %94
  %v96 = vsub.f32 %v91, %v93
  %97 = xla_tuple %v96
  %s98 = scalar_lea.vmem %s2, 72
  %99 = vst [vmem:[%s98] sm:$0xff] %v96
  %s100 = scalar_lea.vmem %s0, 80
  %v101 = vld [vmem:[%s100] sm:$0xff]
  %s102 = scalar_lea.vmem %s1, 80
  %v103 = vld [vmem:[%s102] sm:$0xff]
  %104 = xla_tuple %v101, %v103
  %105 = xla_tuple %104
  %v106 = vsub.f32 %v101, %v103
  %107 = xla_tuple %v106
  %s108 = scalar_lea.vmem %s2, 80
  %109 = vst [vmem:[%s108] sm:$0xff] %v106
  %s110 = scalar_lea.vmem %s0, 88
  %v111 = vld [vmem:[%s110] sm:$0xff]
  %s112 = scalar_lea.vmem %s1, 88
  %v113 = vld [vmem:[%s112] sm:$0xff]
  %114 = xla_tuple %v111, %v113
  %115 = xla_tuple %114
  %v116 = vsub.f32 %v111, %v113
  %117 = xla_tuple %v116
  %s118 = scalar_lea.vmem %s2, 88
  %119 = vst [vmem:[%s118] sm:$0xff] %v116
  %s120 = scalar_lea.vmem %s0, 96
  %v121 = vld [vmem:[%s120] sm:$0xff]
  %s122 = scalar_lea.vmem %s1, 96
  %v123 = vld [vmem:[%s122] sm:$0xff]
  %124 = xla_tuple %v121, %v123
  %125 = xla_tuple %124
  %v126 = vsub.f32 %v121, %v123
  %127 = xla_tuple %v126
  %s128 = scalar_lea.vmem %s2, 96
  %129 = vst [vmem:[%s128] sm:$0xff] %v126
  %s130 = scalar_lea.vmem %s0, 104
  %v131 = vld [vmem:[%s130] sm:$0xff]
  %s132 = scalar_lea.vmem %s1, 104
  %v133 = vld [vmem:[%s132] sm:$0xff]
  %134 = xla_tuple %v131, %v133
  %135 = xla_tuple %134
  %v136 = vsub.f32 %v131, %v133
  %137 = xla_tuple %v136
  %s138 = scalar_lea.vmem %s2, 104
  %139 = vst [vmem:[%s138] sm:$0xff] %v136
  %s140 = scalar_lea.vmem %s0, 112
  %v141 = vld [vmem:[%s140] sm:$0xff]
  %s142 = scalar_lea.vmem %s1, 112
  %v143 = vld [vmem:[%s142] sm:$0xff]
  %144 = xla_tuple %v141, %v143
  %145 = xla_tuple %144
  %v146 = vsub.f32 %v141, %v143
  %147 = xla_tuple %v146
  %s148 = scalar_lea.vmem %s2, 112
  %149 = vst [vmem:[%s148] sm:$0xff] %v146
  %s150 = scalar_lea.vmem %s0, 120
  %v151 = vld [vmem:[%s150] sm:$0xff]
  %s152 = scalar_lea.vmem %s1, 120
  %v153 = vld [vmem:[%s152] sm:$0xff]
  %154 = xla_tuple %v151, %v153
  %155 = xla_tuple %154
  %v156 = vsub.f32 %v151, %v153
  %157 = xla_tuple %v156
  %s158 = scalar_lea.vmem %s2, 120
  %159 = vst [vmem:[%s158] sm:$0xff] %v156
  %s160 = scalar_lea.vmem %s0, 128
  %v161 = vld [vmem:[%s160] sm:$0xff]
  %s162 = scalar_lea.vmem %s1, 128
  %v163 = vld [vmem:[%s162] sm:$0xff]
  %164 = xla_tuple %v161, %v163
  %165 = xla_tuple %164
  %v166 = vsub.f32 %v161, %v163
  %167 = xla_tuple %v166
  %s168 = scalar_lea.vmem %s2, 128
  %169 = vst [vmem:[%s168] sm:$0xff] %v166
  %s170 = scalar_lea.vmem %s0, 136
  %v171 = vld [vmem:[%s170] sm:$0xff]
  %s172 = scalar_lea.vmem %s1, 136
  %v173 = vld [vmem:[%s172] sm:$0xff]
  %174 = xla_tuple %v171, %v173
  %175 = xla_tuple %174
  %v176 = vsub.f32 %v171, %v173
  %177 = xla_tuple %v176
  %s178 = scalar_lea.vmem %s2, 136
  %179 = vst [vmem:[%s178] sm:$0xff] %v176
  %s180 = scalar_lea.vmem %s0, 144
  %v181 = vld [vmem:[%s180] sm:$0xff]
  %s182 = scalar_lea.vmem %s1, 144
  %v183 = vld [vmem:[%s182] sm:$0xff]
  %184 = xla_tuple %v181, %v183
  %185 = xla_tuple %184
  %v186 = vsub.f32 %v181, %v183
  %187 = xla_tuple %v186
  %s188 = scalar_lea.vmem %s2, 144
  %189 = vst [vmem:[%s188] sm:$0xff] %v186
  %s190 = scalar_lea.vmem %s0, 152
  %v191 = vld [vmem:[%s190] sm:$0xff]
  %s192 = scalar_lea.vmem %s1, 152
  %v193 = vld [vmem:[%s192] sm:$0xff]
  %194 = xla_tuple %v191, %v193
  %195 = xla_tuple %194
  %v196 = vsub.f32 %v191, %v193
  %197 = xla_tuple %v196
  %s198 = scalar_lea.vmem %s2, 152
  %199 = vst [vmem:[%s198] sm:$0xff] %v196
  %s200 = scalar_lea.vmem %s0, 160
  %v201 = vld [vmem:[%s200] sm:$0xff]
  %s202 = scalar_lea.vmem %s1, 160
  %v203 = vld [vmem:[%s202] sm:$0xff]
  %204 = xla_tuple %v201, %v203
  %205 = xla_tuple %204
  %v206 = vsub.f32 %v201, %v203
  %207 = xla_tuple %v206
  %s208 = scalar_lea.vmem %s2, 160
  %209 = vst [vmem:[%s208] sm:$0xff] %v206
  %s210 = scalar_lea.vmem %s0, 168
  %v211 = vld [vmem:[%s210] sm:$0xff]
  %s212 = scalar_lea.vmem %s1, 168
  %v213 = vld [vmem:[%s212] sm:$0xff]
  %214 = xla_tuple %v211, %v213
  %215 = xla_tuple %214
  %v216 = vsub.f32 %v211, %v213
  %217 = xla_tuple %v216
  %s218 = scalar_lea.vmem %s2, 168
  %219 = vst [vmem:[%s218] sm:$0xff] %v216
  %s220 = scalar_lea.vmem %s0, 176
  %v221 = vld [vmem:[%s220] sm:$0xff]
  %s222 = scalar_lea.vmem %s1, 176
  %v223 = vld [vmem:[%s222] sm:$0xff]
  %224 = xla_tuple %v221, %v223
  %225 = xla_tuple %224
  %v226 = vsub.f32 %v221, %v223
  %227 = xla_tuple %v226
  %s228 = scalar_lea.vmem %s2, 176
  %229 = vst [vmem:[%s228] sm:$0xff] %v226
  %s230 = scalar_lea.vmem %s0, 184
  %v231 = vld [vmem:[%s230] sm:$0xff]
  %s232 = scalar_lea.vmem %s1, 184
  %v233 = vld [vmem:[%s232] sm:$0xff]
  %234 = xla_tuple %v231, %v233
  %235 = xla_tuple %234
  %v236 = vsub.f32 %v231, %v233
  %237 = xla_tuple %v236
  %s238 = scalar_lea.vmem %s2, 184
  %239 = vst [vmem:[%s238] sm:$0xff] %v236
  %s240 = scalar_lea.vmem %s0, 192
  %v241 = vld [vmem:[%s240] sm:$0xff]
  %s242 = scalar_lea.vmem %s1, 192
  %v243 = vld [vmem:[%s242] sm:$0xff]
  %244 = xla_tuple %v241, %v243
  %245 = xla_tuple %244
  %v246 = vsub.f32 %v241, %v243
  %247 = xla_tuple %v246
  %s248 = scalar_lea.vmem %s2, 192
  %249 = vst [vmem:[%s248] sm:$0xff] %v246
  %s250 = scalar_lea.vmem %s0, 200
  %v251 = vld [vmem:[%s250] sm:$0xff]
  %s252 = scalar_lea.vmem %s1, 200
  %v253 = vld [vmem:[%s252] sm:$0xff]
  %254 = xla_tuple %v251, %v253
  %255 = xla_tuple %254
  %v256 = vsub.f32 %v251, %v253
  %257 = xla_tuple %v256
  %s258 = scalar_lea.vmem %s2, 200
  %259 = vst [vmem:[%s258] sm:$0xff] %v256
  %s260 = scalar_lea.vmem %s0, 208
  %v261 = vld [vmem:[%s260] sm:$0xff]
  %s262 = scalar_lea.vmem %s1, 208
  %v263 = vld [vmem:[%s262] sm:$0xff]
  %264 = xla_tuple %v261, %v263
  %265 = xla_tuple %264
  %v266 = vsub.f32 %v261, %v263
  %267 = xla_tuple %v266
  %s268 = scalar_lea.vmem %s2, 208
  %269 = vst [vmem:[%s268] sm:$0xff] %v266
  %s270 = scalar_lea.vmem %s0, 216
  %v271 = vld [vmem:[%s270] sm:$0xff]
  %s272 = scalar_lea.vmem %s1, 216
  %v273 = vld [vmem:[%s272] sm:$0xff]
  %274 = xla_tuple %v271, %v273
  %275 = xla_tuple %274
  %v276 = vsub.f32 %v271, %v273
  %277 = xla_tuple %v276
  %s278 = scalar_lea.vmem %s2, 216
  %279 = vst [vmem:[%s278] sm:$0xff] %v276
  %s280 = scalar_lea.vmem %s0, 224
  %v281 = vld [vmem:[%s280] sm:$0xff]
  %s282 = scalar_lea.vmem %s1, 224
  %v283 = vld [vmem:[%s282] sm:$0xff]
  %284 = xla_tuple %v281, %v283
  %285 = xla_tuple %284
  %v286 = vsub.f32 %v281, %v283
  %287 = xla_tuple %v286
  %s288 = scalar_lea.vmem %s2, 224
  %289 = vst [vmem:[%s288] sm:$0xff] %v286
  %s290 = scalar_lea.vmem %s0, 232
  %v291 = vld [vmem:[%s290] sm:$0xff]
  %s292 = scalar_lea.vmem %s1, 232
  %v293 = vld [vmem:[%s292] sm:$0xff]
  %294 = xla_tuple %v291, %v293
  %295 = xla_tuple %294
  %v296 = vsub.f32 %v291, %v293
  %297 = xla_tuple %v296
  %s298 = scalar_lea.vmem %s2, 232
  %299 = vst [vmem:[%s298] sm:$0xff] %v296
  %s300 = scalar_lea.vmem %s0, 240
  %v301 = vld [vmem:[%s300] sm:$0xff]
  %s302 = scalar_lea.vmem %s1, 240
  %v303 = vld [vmem:[%s302] sm:$0xff]
  %304 = xla_tuple %v301, %v303
  %305 = xla_tuple %304
  %v306 = vsub.f32 %v301, %v303
  %307 = xla_tuple %v306
  %s308 = scalar_lea.vmem %s2, 240
  %309 = vst [vmem:[%s308] sm:$0xff] %v306
  %s310 = scalar_lea.vmem %s0, 248
  %v311 = vld [vmem:[%s310] sm:$0xff]
  %s312 = scalar_lea.vmem %s1, 248
  %v313 = vld [vmem:[%s312] sm:$0xff]
  %314 = xla_tuple %v311, %v313
  %315 = xla_tuple %314
  %v316 = vsub.f32 %v311, %v313
  %317 = xla_tuple %v316
  %s318 = scalar_lea.vmem %s2, 248
  %319 = vst [vmem:[%s318] sm:$0xff] %v316

// kernel: sub.28
$region0: #{sub.28}
  #allocation0 [shape = 's32[1]{0}', space=sflag, size = 0x4, scoped, tag = 'scoped memory for sub.28']
  %s0 = inlined_call_operand.vmem [shape: f32[32,8,4], index: 0, kind: input, shape index: {}]
  %s1 = inlined_call_operand.vmem [shape: f32[32,8,4], index: 1, kind: input, shape index: {}]
  %s2 = inlined_call_operand.vmem [shape: f32[32,8,4], index: 2, kind: output, shape index: {}]
  %v3 = vld [vmem:[%s0] sm:$0xff]
  %v4 = vld [vmem:[%s1] sm:$0xff]
  %5 = xla_tuple %v3, %v4
  %6 = xla_tuple %5
  %v7 = vsub.f32 %v3, %v4
  %8 = xla_tuple %v7
  %9 = vst [vmem:[%s2] sm:$0xff] %v7
  %s10 = scalar_lea.vmem %s0, 8
  %v11 = vld [vmem:[%s10] sm:$0xff]
  %s12 = scalar_lea.vmem %s1, 8
  %v13 = vld [vmem:[%s12] sm:$0xff]
  %14 = xla_tuple %v11, %v13
  %15 = xla_tuple %14
  %v16 = vsub.f32 %v11, %v13
  %17 = xla_tuple %v16
  %s18 = scalar_lea.vmem %s2, 8
  %19 = vst [vmem:[%s18] sm:$0xff] %v16
  %s20 = scalar_lea.vmem %s0, 16
  %v21 = vld [vmem:[%s20] sm:$0xff]
  %s22 = scalar_lea.vmem %s1, 16
  %v23 = vld [vmem:[%s22] sm:$0xff]
  %24 = xla_tuple %v21, %v23
  %25 = xla_tuple %24
  %v26 = vsub.f32 %v21, %v23
  %27 = xla_tuple %v26
  %s28 = scalar_lea.vmem %s2, 16
  %29 = vst [vmem:[%s28] sm:$0xff] %v26
  %s30 = scalar_lea.vmem %s0, 24
  %v31 = vld [vmem:[%s30] sm:$0xff]
  %s32 = scalar_lea.vmem %s1, 24
  %v33 = vld [vmem:[%s32] sm:$0xff]
  %34 = xla_tuple %v31, %v33
  %35 = xla_tuple %34
  %v36 = vsub.f32 %v31, %v33
  %37 = xla_tuple %v36
  %s38 = scalar_lea.vmem %s2, 24
  %39 = vst [vmem:[%s38] sm:$0xff] %v36
  %s40 = scalar_lea.vmem %s0, 32
  %v41 = vld [vmem:[%s40] sm:$0xff]
  %s42 = scalar_lea.vmem %s1, 32
  %v43 = vld [vmem:[%s42] sm:$0xff]
  %44 = xla_tuple %v41, %v43
  %45 = xla_tuple %44
  %v46 = vsub.f32 %v41, %v43
  %47 = xla_tuple %v46
  %s48 = scalar_lea.vmem %s2, 32
  %49 = vst [vmem:[%s48] sm:$0xff] %v46
  %s50 = scalar_lea.vmem %s0, 40
  %v51 = vld [vmem:[%s50] sm:$0xff]
  %s52 = scalar_lea.vmem %s1, 40
  %v53 = vld [vmem:[%s52] sm:$0xff]
  %54 = xla_tuple %v51, %v53
  %55 = xla_tuple %54
  %v56 = vsub.f32 %v51, %v53
  %57 = xla_tuple %v56
  %s58 = scalar_lea.vmem %s2, 40
  %59 = vst [vmem:[%s58] sm:$0xff] %v56
  %s60 = scalar_lea.vmem %s0, 48
  %v61 = vld [vmem:[%s60] sm:$0xff]
  %s62 = scalar_lea.vmem %s1, 48
  %v63 = vld [vmem:[%s62] sm:$0xff]
  %64 = xla_tuple %v61, %v63
  %65 = xla_tuple %64
  %v66 = vsub.f32 %v61, %v63
  %67 = xla_tuple %v66
  %s68 = scalar_lea.vmem %s2, 48
  %69 = vst [vmem:[%s68] sm:$0xff] %v66
  %s70 = scalar_lea.vmem %s0, 56
  %v71 = vld [vmem:[%s70] sm:$0xff]
  %s72 = scalar_lea.vmem %s1, 56
  %v73 = vld [vmem:[%s72] sm:$0xff]
  %74 = xla_tuple %v71, %v73
  %75 = xla_tuple %74
  %v76 = vsub.f32 %v71, %v73
  %77 = xla_tuple %v76
  %s78 = scalar_lea.vmem %s2, 56
  %79 = vst [vmem:[%s78] sm:$0xff] %v76
  %s80 = scalar_lea.vmem %s0, 64
  %v81 = vld [vmem:[%s80] sm:$0xff]
  %s82 = scalar_lea.vmem %s1, 64
  %v83 = vld [vmem:[%s82] sm:$0xff]
  %84 = xla_tuple %v81, %v83
  %85 = xla_tuple %84
  %v86 = vsub.f32 %v81, %v83
  %87 = xla_tuple %v86
  %s88 = scalar_lea.vmem %s2, 64
  %89 = vst [vmem:[%s88] sm:$0xff] %v86
  %s90 = scalar_lea.vmem %s0, 72
  %v91 = vld [vmem:[%s90] sm:$0xff]
  %s92 = scalar_lea.vmem %s1, 72
  %v93 = vld [vmem:[%s92] sm:$0xff]
  %94 = xla_tuple %v91, %v93
  %95 = xla_tuple %94
  %v96 = vsub.f32 %v91, %v93
  %97 = xla_tuple %v96
  %s98 = scalar_lea.vmem %s2, 72
  %99 = vst [vmem:[%s98] sm:$0xff] %v96
  %s100 = scalar_lea.vmem %s0, 80
  %v101 = vld [vmem:[%s100] sm:$0xff]
  %s102 = scalar_lea.vmem %s1, 80
  %v103 = vld [vmem:[%s102] sm:$0xff]
  %104 = xla_tuple %v101, %v103
  %105 = xla_tuple %104
  %v106 = vsub.f32 %v101, %v103
  %107 = xla_tuple %v106
  %s108 = scalar_lea.vmem %s2, 80
  %109 = vst [vmem:[%s108] sm:$0xff] %v106
  %s110 = scalar_lea.vmem %s0, 88
  %v111 = vld [vmem:[%s110] sm:$0xff]
  %s112 = scalar_lea.vmem %s1, 88
  %v113 = vld [vmem:[%s112] sm:$0xff]
  %114 = xla_tuple %v111, %v113
  %115 = xla_tuple %114
  %v116 = vsub.f32 %v111, %v113
  %117 = xla_tuple %v116
  %s118 = scalar_lea.vmem %s2, 88
  %119 = vst [vmem:[%s118] sm:$0xff] %v116
  %s120 = scalar_lea.vmem %s0, 96
  %v121 = vld [vmem:[%s120] sm:$0xff]
  %s122 = scalar_lea.vmem %s1, 96
  %v123 = vld [vmem:[%s122] sm:$0xff]
  %124 = xla_tuple %v121, %v123
  %125 = xla_tuple %124
  %v126 = vsub.f32 %v121, %v123
  %127 = xla_tuple %v126
  %s128 = scalar_lea.vmem %s2, 96
  %129 = vst [vmem:[%s128] sm:$0xff] %v126
  %s130 = scalar_lea.vmem %s0, 104
  %v131 = vld [vmem:[%s130] sm:$0xff]
  %s132 = scalar_lea.vmem %s1, 104
  %v133 = vld [vmem:[%s132] sm:$0xff]
  %134 = xla_tuple %v131, %v133
  %135 = xla_tuple %134
  %v136 = vsub.f32 %v131, %v133
  %137 = xla_tuple %v136
  %s138 = scalar_lea.vmem %s2, 104
  %139 = vst [vmem:[%s138] sm:$0xff] %v136
  %s140 = scalar_lea.vmem %s0, 112
  %v141 = vld [vmem:[%s140] sm:$0xff]
  %s142 = scalar_lea.vmem %s1, 112
  %v143 = vld [vmem:[%s142] sm:$0xff]
  %144 = xla_tuple %v141, %v143
  %145 = xla_tuple %144
  %v146 = vsub.f32 %v141, %v143
  %147 = xla_tuple %v146
  %s148 = scalar_lea.vmem %s2, 112
  %149 = vst [vmem:[%s148] sm:$0xff] %v146
  %s150 = scalar_lea.vmem %s0, 120
  %v151 = vld [vmem:[%s150] sm:$0xff]
  %s152 = scalar_lea.vmem %s1, 120
  %v153 = vld [vmem:[%s152] sm:$0xff]
  %154 = xla_tuple %v151, %v153
  %155 = xla_tuple %154
  %v156 = vsub.f32 %v151, %v153
  %157 = xla_tuple %v156
  %s158 = scalar_lea.vmem %s2, 120
  %159 = vst [vmem:[%s158] sm:$0xff] %v156
  %s160 = scalar_lea.vmem %s0, 128
  %v161 = vld [vmem:[%s160] sm:$0xff]
  %s162 = scalar_lea.vmem %s1, 128
  %v163 = vld [vmem:[%s162] sm:$0xff]
  %164 = xla_tuple %v161, %v163
  %165 = xla_tuple %164
  %v166 = vsub.f32 %v161, %v163
  %167 = xla_tuple %v166
  %s168 = scalar_lea.vmem %s2, 128
  %169 = vst [vmem:[%s168] sm:$0xff] %v166
  %s170 = scalar_lea.vmem %s0, 136
  %v171 = vld [vmem:[%s170] sm:$0xff]
  %s172 = scalar_lea.vmem %s1, 136
  %v173 = vld [vmem:[%s172] sm:$0xff]
  %174 = xla_tuple %v171, %v173
  %175 = xla_tuple %174
  %v176 = vsub.f32 %v171, %v173
  %177 = xla_tuple %v176
  %s178 = scalar_lea.vmem %s2, 136
  %179 = vst [vmem:[%s178] sm:$0xff] %v176
  %s180 = scalar_lea.vmem %s0, 144
  %v181 = vld [vmem:[%s180] sm:$0xff]
  %s182 = scalar_lea.vmem %s1, 144
  %v183 = vld [vmem:[%s182] sm:$0xff]
  %184 = xla_tuple %v181, %v183
  %185 = xla_tuple %184
  %v186 = vsub.f32 %v181, %v183
  %187 = xla_tuple %v186
  %s188 = scalar_lea.vmem %s2, 144
  %189 = vst [vmem:[%s188] sm:$0xff] %v186
  %s190 = scalar_lea.vmem %s0, 152
  %v191 = vld [vmem:[%s190] sm:$0xff]
  %s192 = scalar_lea.vmem %s1, 152
  %v193 = vld [vmem:[%s192] sm:$0xff]
  %194 = xla_tuple %v191, %v193
  %195 = xla_tuple %194
  %v196 = vsub.f32 %v191, %v193
  %197 = xla_tuple %v196
  %s198 = scalar_lea.vmem %s2, 152
  %199 = vst [vmem:[%s198] sm:$0xff] %v196
  %s200 = scalar_lea.vmem %s0, 160
  %v201 = vld [vmem:[%s200] sm:$0xff]
  %s202 = scalar_lea.vmem %s1, 160
  %v203 = vld [vmem:[%s202] sm:$0xff]
  %204 = xla_tuple %v201, %v203
  %205 = xla_tuple %204
  %v206 = vsub.f32 %v201, %v203
  %207 = xla_tuple %v206
  %s208 = scalar_lea.vmem %s2, 160
  %209 = vst [vmem:[%s208] sm:$0xff] %v206
  %s210 = scalar_lea.vmem %s0, 168
  %v211 = vld [vmem:[%s210] sm:$0xff]
  %s212 = scalar_lea.vmem %s1, 168
  %v213 = vld [vmem:[%s212] sm:$0xff]
  %214 = xla_tuple %v211, %v213
  %215 = xla_tuple %214
  %v216 = vsub.f32 %v211, %v213
  %217 = xla_tuple %v216
  %s218 = scalar_lea.vmem %s2, 168
  %219 = vst [vmem:[%s218] sm:$0xff] %v216
  %s220 = scalar_lea.vmem %s0, 176
  %v221 = vld [vmem:[%s220] sm:$0xff]
  %s222 = scalar_lea.vmem %s1, 176
  %v223 = vld [vmem:[%s222] sm:$0xff]
  %224 = xla_tuple %v221, %v223
  %225 = xla_tuple %224
  %v226 = vsub.f32 %v221, %v223
  %227 = xla_tuple %v226
  %s228 = scalar_lea.vmem %s2, 176
  %229 = vst [vmem:[%s228] sm:$0xff] %v226
  %s230 = scalar_lea.vmem %s0, 184
  %v231 = vld [vmem:[%s230] sm:$0xff]
  %s232 = scalar_lea.vmem %s1, 184
  %v233 = vld [vmem:[%s232] sm:$0xff]
  %234 = xla_tuple %v231, %v233
  %235 = xla_tuple %234
  %v236 = vsub.f32 %v231, %v233
  %237 = xla_tuple %v236
  %s238 = scalar_lea.vmem %s2, 184
  %239 = vst [vmem:[%s238] sm:$0xff] %v236
  %s240 = scalar_lea.vmem %s0, 192
  %v241 = vld [vmem:[%s240] sm:$0xff]
  %s242 = scalar_lea.vmem %s1, 192
  %v243 = vld [vmem:[%s242] sm:$0xff]
  %244 = xla_tuple %v241, %v243
  %245 = xla_tuple %244
  %v246 = vsub.f32 %v241, %v243
  %247 = xla_tuple %v246
  %s248 = scalar_lea.vmem %s2, 192
  %249 = vst [vmem:[%s248] sm:$0xff] %v246
  %s250 = scalar_lea.vmem %s0, 200
  %v251 = vld [vmem:[%s250] sm:$0xff]
  %s252 = scalar_lea.vmem %s1, 200
  %v253 = vld [vmem:[%s252] sm:$0xff]
  %254 = xla_tuple %v251, %v253
  %255 = xla_tuple %254
  %v256 = vsub.f32 %v251, %v253
  %257 = xla_tuple %v256
  %s258 = scalar_lea.vmem %s2, 200
  %259 = vst [vmem:[%s258] sm:$0xff] %v256
  %s260 = scalar_lea.vmem %s0, 208
  %v261 = vld [vmem:[%s260] sm:$0xff]
  %s262 = scalar_lea.vmem %s1, 208
  %v263 = vld [vmem:[%s262] sm:$0xff]
  %264 = xla_tuple %v261, %v263
  %265 = xla_tuple %264
  %v266 = vsub.f32 %v261, %v263
  %267 = xla_tuple %v266
  %s268 = scalar_lea.vmem %s2, 208
  %269 = vst [vmem:[%s268] sm:$0xff] %v266
  %s270 = scalar_lea.vmem %s0, 216
  %v271 = vld [vmem:[%s270] sm:$0xff]
  %s272 = scalar_lea.vmem %s1, 216
  %v273 = vld [vmem:[%s272] sm:$0xff]
  %274 = xla_tuple %v271, %v273
  %275 = xla_tuple %274
  %v276 = vsub.f32 %v271, %v273
  %277 = xla_tuple %v276
  %s278 = scalar_lea.vmem %s2, 216
  %279 = vst [vmem:[%s278] sm:$0xff] %v276
  %s280 = scalar_lea.vmem %s0, 224
  %v281 = vld [vmem:[%s280] sm:$0xff]
  %s282 = scalar_lea.vmem %s1, 224
  %v283 = vld [vmem:[%s282] sm:$0xff]
  %284 = xla_tuple %v281, %v283
  %285 = xla_tuple %284
  %v286 = vsub.f32 %v281, %v283
  %287 = xla_tuple %v286
  %s288 = scalar_lea.vmem %s2, 224
  %289 = vst [vmem:[%s288] sm:$0xff] %v286
  %s290 = scalar_lea.vmem %s0, 232
  %v291 = vld [vmem:[%s290] sm:$0xff]
  %s292 = scalar_lea.vmem %s1, 232
  %v293 = vld [vmem:[%s292] sm:$0xff]
  %294 = xla_tuple %v291, %v293
  %295 = xla_tuple %294
  %v296 = vsub.f32 %v291, %v293
  %297 = xla_tuple %v296
  %s298 = scalar_lea.vmem %s2, 232
  %299 = vst [vmem:[%s298] sm:$0xff] %v296
  %s300 = scalar_lea.vmem %s0, 240
  %v301 = vld [vmem:[%s300] sm:$0xff]
  %s302 = scalar_lea.vmem %s1, 240
  %v303 = vld [vmem:[%s302] sm:$0xff]
  %304 = xla_tuple %v301, %v303
  %305 = xla_tuple %304
  %v306 = vsub.f32 %v301, %v303
  %307 = xla_tuple %v306
  %s308 = scalar_lea.vmem %s2, 240
  %309 = vst [vmem:[%s308] sm:$0xff] %v306
  %s310 = scalar_lea.vmem %s0, 248
  %v311 = vld [vmem:[%s310] sm:$0xff]
  %s312 = scalar_lea.vmem %s1, 248
  %v313 = vld [vmem:[%s312] sm:$0xff]
  %314 = xla_tuple %v311, %v313
  %315 = xla_tuple %314
  %v316 = vsub.f32 %v311, %v313
  %317 = xla_tuple %v316
  %s318 = scalar_lea.vmem %s2, 248
  %319 = vst [vmem:[%s318] sm:$0xff] %v316

// kernel: s4d_kernel_pallas.1
$region0: #{s4d_kernel_pallas.1}
  #allocation0 [shape = 'u32[]', space=smem, size = 0x4, offset = 0x4, fixed_abs, tag = 'smem constant byte address 0x4 - core index']
  #allocation1 [shape = 'u32[144,128]{1,0:T(1,128)}', space=vmem, size = 0x12000, scoped, tag = 'internal scratch']
  %s0 = inlined_call_operand.vmem [shape: f32[2,8,32], index: 0, kind: input, shape index: {}]
  %s1 = inlined_call_operand.vmem [shape: f32[2,8,32], index: 1, kind: input, shape index: {}]
  %s2 = inlined_call_operand.vmem [shape: f32[32,8,512], index: 2, kind: input, shape index: {}]
  %s3 = inlined_call_operand.vmem [shape: f32[32,8,512], index: 3, kind: input, shape index: {}]
  %s4 = inlined_call_operand.hbm [shape: f32[8,1024], index: 4, kind: output, shape index: {}]
  %s5 = sld [smem:[#allocation0]]
  $region49: #{s4d_kernel_pallas.1} parent=0
    _
  %s7 = ssub.s32 1, %s5
  %s8 = scalar_select 0, %s7, %s5
  $region1: #{s4d_kernel_pallas.1} parent=0
    #allocation2 [shape = 'u8[32768]{0}', space=vmem, size = 0x8000, scoped, tag = 'output window, operand 0']
    #allocation3 [shape = 's32[2]{0}', space=sflag, size = 0x8, scoped, tag = 'scoped memory for s4d_kernel_pallas.1']
    %9 = vsyncpa [#allocation3], 0
    %s10 = scalar_lea.sflag [#allocation3], 1
    %11 = vsyncpa %s10, 0
    loop: start=0, step=1, limit=4
    $region2: #{s4d_kernel_pallas.1} parent=1 // loop_pre_header
      _
    $region3: #{s4d_kernel_pallas.1} parent=1 // loop_header
      %s13 = sphi 0, %s17
      %p14 = scmp.ge.s32.totalorder %s13, 4
      %s20 = sphi 0, %s32
      %s21 = sphi 0, %s28
      %s22 = sphi 0, %s20
      %s23 = sphi 0, %s21
      %s24 = sphi 0, %s22
      %s25 = sphi 0, %s23
      %s37 = sphi 0, %s39
      %s40 = sphi 0, %s37
      %s41 = sphi 0, %s40
      %s57 = sphi 0, %s41
      %s65 = sphi 0, %s67
      %s68 = sphi 0, %s65
      %s69 = sphi 0, %s68
      %s85 = sphi 0, %s69
      %s91 = sphi 0, %s93
      %s94 = sphi 0, %s91
      %s95 = sphi 0, %s94
      %s111 = sphi 0, %s95
      %s117 = sphi 0, %s119
      %s120 = sphi 0, %s117
      %s121 = sphi 0, %s120
      %s137 = sphi 0, %s121
      %s145 = sphi 0, %s147
      %s148 = sphi 0, %s145
      %s149 = sphi 0, %s148
      %s165 = sphi 0, %s149
    $region4: #{s4d_kernel_pallas.1} parent=1 // loop_header_branch
      %16 = sbr.rel (%p14) target = $region8
    $region5: #{s4d_kernel_pallas.1} parent=1 // loop_body
      %s18 = ssub.s32 %s13, 1
      %s19 = ssub.s32 %s13, 2
      %s26 = sadd.s32 1, %s21
      %p27 = scmp.ge.s32.totalorder %s26, 2
      %s28 = scalar_select %p27, 0, %s26
      %s29 = sadd.s32 1, %s20
      %s30 = scalar_select %p27, %s29, %s20
      %p31 = scmp.ge.s32.totalorder %s30, 1
      %s32 = scalar_select %p31, 0, %s30
      %s33 = ssub.s32 %s21, %s28
      %s34 = ssub.s32 %s20, %s32
      %s35 = sor.u32 %s33, %s34
      %p36 = scmp.eq.s32.totalorder %s35, 0
      %s38 = sadd.s32 %s37, 1
      %s39 = scalar_select %p36, %s37, %s38
      %p42 = pneg %p36
      %p43 = scmp.eq.s32.totalorder %s13, 1
      %p44 = por %p42, %p43
      %p45 = scmp.ne.s32.totalorder %s37, %s40
      %p46 = scmp.eq.s32.totalorder %s13, 0
      %p47 = por %p45, %p46
      %p48 = scmp.ne.s32.totalorder %s37, %s40
      %p49 = scmp.eq.s32.totalorder %s18, 1
      %p50 = por %p48, %p49
      %p51 = scmp.ne.s32.totalorder %s40, %s41
      %p52 = scmp.eq.s32.totalorder %s18, 0
      %p53 = por %p51, %p52
      %p54 = scmp.ne.s32.totalorder %s40, %s41
      %p55 = scmp.eq.s32.totalorder %s19, 1
      %p56 = por %p54, %p55
      %p58 = scmp.ne.s32.totalorder %s41, %s57
      %p59 = scmp.eq.s32.totalorder %s19, 0
      %p60 = por %p58, %p59
      %s61 = ssub.s32 %s21, %s28
      %s62 = ssub.s32 %s20, %s32
      %s63 = sor.u32 %s61, %s62
      %p64 = scmp.eq.s32.totalorder %s63, 0
      %s66 = sadd.s32 %s65, 1
      %s67 = scalar_select %p64, %s65, %s66
      %p70 = pneg %p64
      %p71 = scmp.eq.s32.totalorder %s13, 1
      %p72 = por %p70, %p71
      %p73 = scmp.ne.s32.totalorder %s65, %s68
      %p74 = scmp.eq.s32.totalorder %s13, 0
      %p75 = por %p73, %p74
      %p76 = scmp.ne.s32.totalorder %s65, %s68
      %p77 = scmp.eq.s32.totalorder %s18, 1
      %p78 = por %p76, %p77
      %p79 = scmp.ne.s32.totalorder %s68, %s69
      %p80 = scmp.eq.s32.totalorder %s18, 0
      %p81 = por %p79, %p80
      %p82 = scmp.ne.s32.totalorder %s68, %s69
      %p83 = scmp.eq.s32.totalorder %s19, 1
      %p84 = por %p82, %p83
      %p86 = scmp.ne.s32.totalorder %s69, %s85
      %p87 = scmp.eq.s32.totalorder %s19, 0
      %p88 = por %p86, %p87
      %s89 = ssub.s32 %s20, %s32
      %p90 = scmp.eq.s32.totalorder %s89, 0
      %s92 = sadd.s32 %s91, 1
      %s93 = scalar_select %p90, %s91, %s92
      %p96 = pneg %p90
      %p97 = scmp.eq.s32.totalorder %s13, 1
      %p98 = por %p96, %p97
      %p99 = scmp.ne.s32.totalorder %s91, %s94
      %p100 = scmp.eq.s32.totalorder %s13, 0
      %p101 = por %p99, %p100
      %p102 = scmp.ne.s32.totalorder %s91, %s94
      %p103 = scmp.eq.s32.totalorder %s18, 1
      %p104 = por %p102, %p103
      %p105 = scmp.ne.s32.totalorder %s94, %s95
      %p106 = scmp.eq.s32.totalorder %s18, 0
      %p107 = por %p105, %p106
      %p108 = scmp.ne.s32.totalorder %s94, %s95
      %p109 = scmp.eq.s32.totalorder %s19, 1
      %p110 = por %p108, %p109
      %p112 = scmp.ne.s32.totalorder %s95, %s111
      %p113 = scmp.eq.s32.totalorder %s19, 0
      %p114 = por %p112, %p113
      %s115 = ssub.s32 %s20, %s32
      %p116 = scmp.eq.s32.totalorder %s115, 0
      %s118 = sadd.s32 %s117, 1
      %s119 = scalar_select %p116, %s117, %s118
      %p122 = pneg %p116
      %p123 = scmp.eq.s32.totalorder %s13, 1
      %p124 = por %p122, %p123
      %p125 = scmp.ne.s32.totalorder %s117, %s120
      %p126 = scmp.eq.s32.totalorder %s13, 0
      %p127 = por %p125, %p126
      %p128 = scmp.ne.s32.totalorder %s117, %s120
      %p129 = scmp.eq.s32.totalorder %s18, 1
      %p130 = por %p128, %p129
      %p131 = scmp.ne.s32.totalorder %s120, %s121
      %p132 = scmp.eq.s32.totalorder %s18, 0
      %p133 = por %p131, %p132
      %p134 = scmp.ne.s32.totalorder %s120, %s121
      %p135 = scmp.eq.s32.totalorder %s19, 1
      %p136 = por %p134, %p135
      %p138 = scmp.ne.s32.totalorder %s121, %s137
      %p139 = scmp.eq.s32.totalorder %s19, 0
      %p140 = por %p138, %p139
      %s141 = ssub.s32 %s20, %s32
      %s142 = ssub.s32 %s21, %s28
      %s143 = sor.u32 %s141, %s142
      %p144 = scmp.eq.s32.totalorder %s143, 0
      %s146 = sadd.s32 %s145, 1
      %s147 = scalar_select %p144, %s145, %s146
      %p150 = pneg %p144
      %p151 = scmp.eq.s32.totalorder %s13, 1
      %p152 = por %p150, %p151
      %p153 = scmp.ne.s32.totalorder %s145, %s148
      %p154 = scmp.eq.s32.totalorder %s13, 0
      %p155 = por %p153, %p154
      %p156 = scmp.ne.s32.totalorder %s145, %s148
      %p157 = scmp.eq.s32.totalorder %s18, 1
      %p158 = por %p156, %p157
      %p159 = scmp.ne.s32.totalorder %s148, %s149
      %p160 = scmp.eq.s32.totalorder %s18, 0
      %p161 = por %p159, %p160
      %p162 = scmp.ne.s32.totalorder %s148, %s149
      %p163 = scmp.eq.s32.totalorder %s19, 1
      %p164 = por %p162, %p163
      %p166 = scmp.ne.s32.totalorder %s149, %s165
      %p167 = scmp.eq.s32.totalorder %s19, 0
      %p168 = por %p166, %p167
      %p169 = scmp.le.s32.totalorder 1, %s13
      %p170 = scmp.lt.s32.totalorder %s13, 3
      %p171 = pnand %p169, %p170
      %p172 = pneg %p171
      // Predicated region
      $region9: #{s4d_kernel_pallas.1} parent=5 // pred_check
        _
      $region10: #{s4d_kernel_pallas.1} parent=5 // pred_check_branch
        %174 = sbr.rel (%p171) target = $region12
      $region11: #{s4d_kernel_pallas.1} parent=5 // pred_region
        %s175 = ssub.s32 %s13, 1
        // Predicated region
        $region13: #{s4d_kernel_pallas.1} parent=11 // pred_check
          %p176 = pneg %p107
        $region14: #{s4d_kernel_pallas.1} parent=11 // pred_check_branch
          %178 = sbr.rel (%p176) target = $region16
        $region15: #{s4d_kernel_pallas.1} parent=11 // pred_region
          %p179 = scmp.lt.s32.totalorder %s22, 0
          %s180 = scalar_select %p179, %s22, 0
          %s181 = smul.addr %s180, 4
          %s182 = smul.addr %s181, 8
          %s183 = scalar_lea.vmem %s2, %s182
        $region16: #{s4d_kernel_pallas.1} parent=11 // pred_fallthru
          _
        // Predicated region
        $region17: #{s4d_kernel_pallas.1} parent=11 // pred_check
          %p184 = pneg %p133
        $region18: #{s4d_kernel_pallas.1} parent=11 // pred_check_branch
          %186 = sbr.rel (%p184) target = $region20
        $region19: #{s4d_kernel_pallas.1} parent=11 // pred_region
          %p187 = scmp.lt.s32.totalorder %s22, 0
          %s188 = scalar_select %p187, %s22, 0
          %s189 = smul.addr %s188, 4
          %s190 = smul.addr %s189, 8
          %s191 = scalar_lea.vmem %s3, %s190
        $region20: #{s4d_kernel_pallas.1} parent=11 // pred_fallthru
          _
      $region12: #{s4d_kernel_pallas.1} parent=5 // pred_fallthru
        _
      %p192 = scmp.lt.s32.totalorder %s13, 2
      // Predicated region
      $region21: #{s4d_kernel_pallas.1} parent=5 // pred_check
        %p193 = pneg %p192
      $region22: #{s4d_kernel_pallas.1} parent=5 // pred_check_branch
        %195 = sbr.rel (%p193) target = $region24
      $region23: #{s4d_kernel_pallas.1} parent=5 // pred_region
        // Predicated region
        $region25: #{s4d_kernel_pallas.1} parent=23 // pred_check
          %p196 = pneg %p47
        $region26: #{s4d_kernel_pallas.1} parent=23 // pred_check_branch
          %198 = sbr.rel (%p196) target = $region28
        $region27: #{s4d_kernel_pallas.1} parent=23 // pred_region
          %p199 = scmp.lt.s32.totalorder %s21, 1
          %s200 = scalar_select %p199, %s21, 1
          %p201 = scmp.lt.s32.totalorder %s20, 0
          %s202 = scalar_select %p201, %s20, 0
          %s203 = sadd.s32 %s202, %s200
          %s204 = smul.addr %s203, 8
          %s205 = scalar_lea.vmem %s0, %s204
        $region28: #{s4d_kernel_pallas.1} parent=23 // pred_fallthru
          _
        // Predicated region
        $region29: #{s4d_kernel_pallas.1} parent=23 // pred_check
          %p206 = pneg %p75
        $region30: #{s4d_kernel_pallas.1} parent=23 // pred_check_branch
          %208 = sbr.rel (%p206) target = $region32
        $region31: #{s4d_kernel_pallas.1} parent=23 // pred_region
          %p209 = scmp.lt.s32.totalorder %s21, 1
          %s210 = scalar_select %p209, %s21, 1
          %p211 = scmp.lt.s32.totalorder %s20, 0
          %s212 = scalar_select %p211, %s20, 0
          %s213 = sadd.s32 %s212, %s210
          %s214 = smul.addr %s213, 8
          %s215 = scalar_lea.vmem %s1, %s214
        $region32: #{s4d_kernel_pallas.1} parent=23 // pred_fallthru
          _
      $region24: #{s4d_kernel_pallas.1} parent=5 // pred_fallthru
        _
      %p216 = scmp.le.s32.totalorder 1, %s13
      %p217 = scmp.lt.s32.totalorder %s13, 3
      %p218 = pnand %p216, %p217
      %p219 = pneg %p218
      // Predicated region
      $region33: #{s4d_kernel_pallas.1} parent=5 // pred_check
        _
      $region34: #{s4d_kernel_pallas.1} parent=5 // pred_check_branch
        %221 = sbr.rel (%p218) target = $region36
      $region35: #{s4d_kernel_pallas.1} parent=5 // pred_region
        %s222 = ssub.s32 %s13, 1
        %p223 = scmp.lt.s32.totalorder %s23, 1
        %s224 = scalar_select %p223, %s23, 1
        %p225 = scmp.lt.s32.totalorder %s22, 0
        %s226 = scalar_select %p225, %s22, 0
        %s227 = sadd.s32 %s226, %s224
        %s228 = smul.addr %s227, 8
        %s229 = scalar_lea.vmem %s0, %s228
        %p230 = pneg %p53
        %p231 = pneg %p50
        %p232 = scmp.lt.s32.totalorder %s23, 1
        %s233 = scalar_select %p232, %s23, 1
        %p234 = scmp.lt.s32.totalorder %s22, 0
        %s235 = scalar_select %p234, %s22, 0
        %s236 = sadd.s32 %s235, %s233
        %s237 = smul.addr %s236, 8
        %s238 = scalar_lea.vmem %s1, %s237
        %p239 = pneg %p81
        %p240 = pneg %p78
        %p241 = scmp.lt.s32.totalorder %s22, 0
        %s242 = scalar_select %p241, %s22, 0
        %s243 = smul.addr %s242, 4
        %s244 = smul.addr %s243, 8
        %s245 = scalar_lea.vmem %s2, %s244
        %p246 = pneg %p107
        %p247 = pneg %p104
        %p248 = scmp.lt.s32.totalorder %s22, 0
        %s249 = scalar_select %p248, %s22, 0
        %s250 = smul.addr %s249, 4
        %s251 = smul.addr %s250, 8
        %s252 = scalar_lea.vmem %s3, %s251
        %p253 = pneg %p133
        %p254 = pneg %p130
        %p255 = pneg %p161
        %p256 = pneg %p158
        %s257 = sand.u32 %s148, 1
        %s258 = scalar_lea.sflag [#allocation3], %s257
        %s259 = sand.u32 %s148, 1
        %s260 = smul.addr %s259, 32
        %s261 = scalar_lea.vmem [#allocation2], %s260
        %p262 = scmp.lt.s32.totalorder %s23, 1
        %s263 = scalar_select %p262, %s23, 1
        %p264 = scmp.lt.s32.totalorder %s22, 0
        %s265 = scalar_select %p264, %s22, 0
        %s266 = sadd.s32 %s265, %s263
        %s267 = smul.addr %s266, 8
        %s268 = scalar_lea.vmem %s0, %s267
        %p269 = scmp.lt.s32.totalorder %s23, 1
        %s270 = scalar_select %p269, %s23, 1
        %p271 = scmp.lt.s32.totalorder %s22, 0
        %s272 = scalar_select %p271, %s22, 0
        %s273 = sadd.s32 %s272, %s270
        %s274 = smul.addr %s273, 8
        %s275 = scalar_lea.vmem %s1, %s274
        %p276 = scmp.lt.s32.totalorder %s22, 0
        %s277 = scalar_select %p276, %s22, 0
        %s278 = smul.addr %s277, 4
        %s279 = smul.addr %s278, 8
        %s280 = scalar_lea.vmem %s2, %s279
        %p281 = scmp.lt.s32.totalorder %s22, 0
        %s282 = scalar_select %p281, %s22, 0
        %s283 = smul.addr %s282, 4
        %s284 = smul.addr %s283, 8
        %s285 = scalar_lea.vmem %s3, %s284
        %s286 = smul.u32 4, %s23
        %v287 = vld [vmem:[%s268] sm:$0xff]
        %v288 = vld [vmem:[%s275] sm:$0xff]
        %v289 = vld [vmem:[%s280] sm:$0xff]
        %v290 = vld [vmem:[%s280 + $0x8] sm:$0xff]
        %v291 = vld [vmem:[%s280 + $0x10] sm:$0xff]
        %v292 = vld [vmem:[%s280 + $0x18] sm:$0xff]
        %294 = vset.pattern.permute.xlu0 0
        %295 = vperm.xlu0 %294, %v287
        %v296 = vpop.permute.xlu0 %295
        %v298 = vmul.f32 %v296, %v289
        %v299 = vmul.f32 %v296, %v290
        %v300 = vmul.f32 %v296, %v291
        %v301 = vmul.f32 %v296, %v292
        %v302 = vld [vmem:[%s285] sm:$0xff]
        %v303 = vld [vmem:[%s285 + $0x8] sm:$0xff]
        %v304 = vld [vmem:[%s285 + $0x10] sm:$0xff]
        %v305 = vld [vmem:[%s285 + $0x18] sm:$0xff]
        %307 = vset.pattern.permute.xlu0 0
        %308 = vperm.xlu0 %307, %v288
        %v309 = vpop.permute.xlu0 %308
        %v311 = vmul.f32 %v309, %v302
        %v312 = vmul.f32 %v309, %v303
        %v313 = vmul.f32 %v309, %v304
        %v314 = vmul.f32 %v309, %v305
        %v315 = vsub.f32 %v298, %v311
        %v316 = vsub.f32 %v299, %v312
        %v317 = vsub.f32 %v300, %v313
        %v318 = vsub.f32 %v301, %v314
        %v319 = vadd.f32 %v315, 0.0
        %v320 = vadd.f32 %v316, 0.0
        %v321 = vadd.f32 %v317, 0.0
        %v322 = vadd.f32 %v318, 0.0
        %s323 = scalar_lea.vmem %s280, 32
        %v324 = vld [vmem:[%s323] sm:$0xff]
        %v325 = vld [vmem:[%s323 + $0x8] sm:$0xff]
        %v326 = vld [vmem:[%s323 + $0x10] sm:$0xff]
        %v327 = vld [vmem:[%s323 + $0x18] sm:$0xff]
        %328 = vset.pattern.permute.xlu0 1
        %329 = vperm.xlu0 %328, %v287
        %v330 = vpop.permute.xlu0 %329
        %v332 = vmul.f32 %v330, %v324
        %v333 = vmul.f32 %v330, %v325
        %v334 = vmul.f32 %v330, %v326
        %v335 = vmul.f32 %v330, %v327
        %s336 = scalar_lea.vmem %s285, 32
        %v337 = vld [vmem:[%s336] sm:$0xff]
        %v338 = vld [vmem:[%s336 + $0x8] sm:$0xff]
        %v339 = vld [vmem:[%s336 + $0x10] sm:$0xff]
        %v340 = vld [vmem:[%s336 + $0x18] sm:$0xff]
        %341 = vset.pattern.permute.xlu0 1
        %342 = vperm.xlu0 %341, %v288
        %v343 = vpop.permute.xlu0 %342
        %v345 = vmul.f32 %v343, %v337
        %v346 = vmul.f32 %v343, %v338
        %v347 = vmul.f32 %v343, %v339
        %v348 = vmul.f32 %v343, %v340
        %v349 = vsub.f32 %v332, %v345
        %v350 = vsub.f32 %v333, %v346
        %v351 = vsub.f32 %v334, %v347
        %v352 = vsub.f32 %v335, %v348
        %v353 = vadd.f32 %v319, %v349
        %v354 = vadd.f32 %v320, %v350
        %v355 = vadd.f32 %v321, %v351
        %v356 = vadd.f32 %v322, %v352
        %s357 = scalar_lea.vmem %s280, 64
        %v358 = vld [vmem:[%s357] sm:$0xff]
        %v359 = vld [vmem:[%s357 + $0x8] sm:$0xff]
        %v360 = vld [vmem:[%s357 + $0x10] sm:$0xff]
        %v361 = vld [vmem:[%s357 + $0x18] sm:$0xff]
        %362 = vset.pattern.permute.xlu0 2
        %363 = vperm.xlu0 %362, %v287
        %v364 = vpop.permute.xlu0 %363
        %v366 = vmul.f32 %v364, %v358
        %v367 = vmul.f32 %v364, %v359
        %v368 = vmul.f32 %v364, %v360
        %v369 = vmul.f32 %v364, %v361
        %s370 = scalar_lea.vmem %s285, 64
        %v371 = vld [vmem:[%s370] sm:$0xff]
        %v372 = vld [vmem:[%s370 + $0x8] sm:$0xff]
        %v373 = vld [vmem:[%s370 + $0x10] sm:$0xff]
        %v374 = vld [vmem:[%s370 + $0x18] sm:$0xff]
        %375 = vset.pattern.permute.xlu0 2
        %376 = vperm.xlu0 %375, %v288
        %v377 = vpop.permute.xlu0 %376
        %v379 = vmul.f32 %v377, %v371
        %v380 = vmul.f32 %v377, %v372
        %v381 = vmul.f32 %v377, %v373
        %v382 = vmul.f32 %v377, %v374
        %v383 = vsub.f32 %v366, %v379
        %v384 = vsub.f32 %v367, %v380
        %v385 = vsub.f32 %v368, %v381
        %v386 = vsub.f32 %v369, %v382
        %v387 = vadd.f32 %v353, %v383
        %v388 = vadd.f32 %v354, %v384
        %v389 = vadd.f32 %v355, %v385
        %v390 = vadd.f32 %v356, %v386
        %s391 = scalar_lea.vmem %s280, 96
        %v392 = vld [vmem:[%s391] sm:$0xff]
        %v393 = vld [vmem:[%s391 + $0x8] sm:$0xff]
        %v394 = vld [vmem:[%s391 + $0x10] sm:$0xff]
        %v395 = vld [vmem:[%s391 + $0x18] sm:$0xff]
        %396 = vset.pattern.permute.xlu0 3
        %397 = vperm.xlu0 %396, %v287
        %v398 = vpop.permute.xlu0 %397
        %v400 = vmul.f32 %v398, %v392
        %v401 = vmul.f32 %v398, %v393
        %v402 = vmul.f32 %v398, %v394
        %v403 = vmul.f32 %v398, %v395
        %s404 = scalar_lea.vmem %s285, 96
        %v405 = vld [vmem:[%s404] sm:$0xff]
        %v406 = vld [vmem:[%s404 + $0x8] sm:$0xff]
        %v407 = vld [vmem:[%s404 + $0x10] sm:$0xff]
        %v408 = vld [vmem:[%s404 + $0x18] sm:$0xff]
        %409 = vset.pattern.permute.xlu0 3
        %410 = vperm.xlu0 %409, %v288
        %v411 = vpop.permute.xlu0 %410
        %v413 = vmul.f32 %v411, %v405
        %v414 = vmul.f32 %v411, %v406
        %v415 = vmul.f32 %v411, %v407
        %v416 = vmul.f32 %v411, %v408
        %v417 = vsub.f32 %v400, %v413
        %v418 = vsub.f32 %v401, %v414
        %v419 = vsub.f32 %v402, %v415
        %v420 = vsub.f32 %v403, %v416
        %v421 = vadd.f32 %v387, %v417
        %v422 = vadd.f32 %v388, %v418
        %v423 = vadd.f32 %v389, %v419
        %v424 = vadd.f32 %v390, %v420
        %s425 = scalar_lea.vmem %s280, 128
        %v426 = vld [vmem:[%s425] sm:$0xff]
        %v427 = vld [vmem:[%s425 + $0x8] sm:$0xff]
        %v428 = vld [vmem:[%s425 + $0x10] sm:$0xff]
        %v429 = vld [vmem:[%s425 + $0x18] sm:$0xff]
        %430 = vset.pattern.permute.xlu0 4
        %431 = vperm.xlu0 %430, %v287
        %v432 = vpop.permute.xlu0 %431
        %v434 = vmul.f32 %v432, %v426
        %v435 = vmul.f32 %v432, %v427
        %v436 = vmul.f32 %v432, %v428
        %v437 = vmul.f32 %v432, %v429
        %s438 = scalar_lea.vmem %s285, 128
        %v439 = vld [vmem:[%s438] sm:$0xff]
        %v440 = vld [vmem:[%s438 + $0x8] sm:$0xff]
        %v441 = vld [vmem:[%s438 + $0x10] sm:$0xff]
        %v442 = vld [vmem:[%s438 + $0x18] sm:$0xff]
        %443 = vset.pattern.permute.xlu0 4
        %444 = vperm.xlu0 %443, %v288
        %v445 = vpop.permute.xlu0 %444
        %v447 = vmul.f32 %v445, %v439
        %v448 = vmul.f32 %v445, %v440
        %v449 = vmul.f32 %v445, %v441
        %v450 = vmul.f32 %v445, %v442
        %v451 = vsub.f32 %v434, %v447
        %v452 = vsub.f32 %v435, %v448
        %v453 = vsub.f32 %v436, %v449
        %v454 = vsub.f32 %v437, %v450
        %v455 = vadd.f32 %v421, %v451
        %v456 = vadd.f32 %v422, %v452
        %v457 = vadd.f32 %v423, %v453
        %v458 = vadd.f32 %v424, %v454
        %s459 = scalar_lea.vmem %s280, 160
        %v460 = vld [vmem:[%s459] sm:$0xff]
        %v461 = vld [vmem:[%s459 + $0x8] sm:$0xff]
        %v462 = vld [vmem:[%s459 + $0x10] sm:$0xff]
        %v463 = vld [vmem:[%s459 + $0x18] sm:$0xff]
        %464 = vset.pattern.permute.xlu0 5
        %465 = vperm.xlu0 %464, %v287
        %v466 = vpop.permute.xlu0 %465
        %v468 = vmul.f32 %v466, %v460
        %v469 = vmul.f32 %v466, %v461
        %v470 = vmul.f32 %v466, %v462
        %v471 = vmul.f32 %v466, %v463
        %s472 = scalar_lea.vmem %s285, 160
        %v473 = vld [vmem:[%s472] sm:$0xff]
        %v474 = vld [vmem:[%s472 + $0x8] sm:$0xff]
        %v475 = vld [vmem:[%s472 + $0x10] sm:$0xff]
        %v476 = vld [vmem:[%s472 + $0x18] sm:$0xff]
        %477 = vset.pattern.permute.xlu0 5
        %478 = vperm.xlu0 %477, %v288
        %v479 = vpop.permute.xlu0 %478
        %v481 = vmul.f32 %v479, %v473
        %v482 = vmul.f32 %v479, %v474
        %v483 = vmul.f32 %v479, %v475
        %v484 = vmul.f32 %v479, %v476
        %v485 = vsub.f32 %v468, %v481
        %v486 = vsub.f32 %v469, %v482
        %v487 = vsub.f32 %v470, %v483
        %v488 = vsub.f32 %v471, %v484
        %v489 = vadd.f32 %v455, %v485
        %v490 = vadd.f32 %v456, %v486
        %v491 = vadd.f32 %v457, %v487
        %v492 = vadd.f32 %v458, %v488
        %s493 = scalar_lea.vmem %s280, 192
        %v494 = vld [vmem:[%s493] sm:$0xff]
        %v495 = vld [vmem:[%s493 + $0x8] sm:$0xff]
        %v496 = vld [vmem:[%s493 + $0x10] sm:$0xff]
        %v497 = vld [vmem:[%s493 + $0x18] sm:$0xff]
        %498 = vset.pattern.permute.xlu0 6
        %499 = vperm.xlu0 %498, %v287
        %v500 = vpop.permute.xlu0 %499
        %v502 = vmul.f32 %v500, %v494
        %v503 = vmul.f32 %v500, %v495
        %v504 = vmul.f32 %v500, %v496
        %v505 = vmul.f32 %v500, %v497
        %s506 = scalar_lea.vmem %s285, 192
        %v507 = vld [vmem:[%s506] sm:$0xff]
        %v508 = vld [vmem:[%s506 + $0x8] sm:$0xff]
        %v509 = vld [vmem:[%s506 + $0x10] sm:$0xff]
        %v510 = vld [vmem:[%s506 + $0x18] sm:$0xff]
        %511 = vset.pattern.permute.xlu0 6
        %512 = vperm.xlu0 %511, %v288
        %v513 = vpop.permute.xlu0 %512
        %v515 = vmul.f32 %v513, %v507
        %v516 = vmul.f32 %v513, %v508
        %v517 = vmul.f32 %v513, %v509
        %v518 = vmul.f32 %v513, %v510
        %v519 = vsub.f32 %v502, %v515
        %v520 = vsub.f32 %v503, %v516
        %v521 = vsub.f32 %v504, %v517
        %v522 = vsub.f32 %v505, %v518
        %v523 = vadd.f32 %v489, %v519
        %v524 = vadd.f32 %v490, %v520
        %v525 = vadd.f32 %v491, %v521
        %v526 = vadd.f32 %v492, %v522
        %s527 = scalar_lea.vmem %s280, 224
        %v528 = vld [vmem:[%s527] sm:$0xff]
        %v529 = vld [vmem:[%s527 + $0x8] sm:$0xff]
        %v530 = vld [vmem:[%s527 + $0x10] sm:$0xff]
        %v531 = vld [vmem:[%s527 + $0x18] sm:$0xff]
        %532 = vset.pattern.permute.xlu0 7
        %533 = vperm.xlu0 %532, %v287
        %v534 = vpop.permute.xlu0 %533
        %v536 = vmul.f32 %v534, %v528
        %v537 = vmul.f32 %v534, %v529
        %v538 = vmul.f32 %v534, %v530
        %v539 = vmul.f32 %v534, %v531
        %s540 = scalar_lea.vmem %s285, 224
        %v541 = vld [vmem:[%s540] sm:$0xff]
        %v542 = vld [vmem:[%s540 + $0x8] sm:$0xff]
        %v543 = vld [vmem:[%s540 + $0x10] sm:$0xff]
        %v544 = vld [vmem:[%s540 + $0x18] sm:$0xff]
        %545 = vset.pattern.permute.xlu0 7
        %546 = vperm.xlu0 %545, %v288
        %v547 = vpop.permute.xlu0 %546
        %v549 = vmul.f32 %v547, %v541
        %v550 = vmul.f32 %v547, %v542
        %v551 = vmul.f32 %v547, %v543
        %v552 = vmul.f32 %v547, %v544
        %v553 = vsub.f32 %v536, %v549
        %v554 = vsub.f32 %v537, %v550
        %v555 = vsub.f32 %v538, %v551
        %v556 = vsub.f32 %v539, %v552
        %v557 = vadd.f32 %v523, %v553
        %v558 = vadd.f32 %v524, %v554
        %v559 = vadd.f32 %v525, %v555
        %v560 = vadd.f32 %v526, %v556
        %s561 = scalar_lea.vmem %s280, 256
        %v562 = vld [vmem:[%s561] sm:$0xff]
        %v563 = vld [vmem:[%s561 + $0x8] sm:$0xff]
        %v564 = vld [vmem:[%s561 + $0x10] sm:$0xff]
        %v565 = vld [vmem:[%s561 + $0x18] sm:$0xff]
        %566 = vset.pattern.permute.xlu0 8
        %567 = vperm.xlu0 %566, %v287
        %v568 = vpop.permute.xlu0 %567
        %v570 = vmul.f32 %v568, %v562
        %v571 = vmul.f32 %v568, %v563
        %v572 = vmul.f32 %v568, %v564
        %v573 = vmul.f32 %v568, %v565
        %s574 = scalar_lea.vmem %s285, 256
        %v575 = vld [vmem:[%s574] sm:$0xff]
        %v576 = vld [vmem:[%s574 + $0x8] sm:$0xff]
        %v577 = vld [vmem:[%s574 + $0x10] sm:$0xff]
        %v578 = vld [vmem:[%s574 + $0x18] sm:$0xff]
        %579 = vset.pattern.permute.xlu0 8
        %580 = vperm.xlu0 %579, %v288
        %v581 = vpop.permute.xlu0 %580
        %v583 = vmul.f32 %v581, %v575
        %v584 = vmul.f32 %v581, %v576
        %v585 = vmul.f32 %v581, %v577
        %v586 = vmul.f32 %v581, %v578
        %v587 = vsub.f32 %v570, %v583
        %v588 = vsub.f32 %v571, %v584
        %v589 = vsub.f32 %v572, %v585
        %v590 = vsub.f32 %v573, %v586
        %v591 = vadd.f32 %v557, %v587
        %v592 = vadd.f32 %v558, %v588
        %v593 = vadd.f32 %v559, %v589
        %v594 = vadd.f32 %v560, %v590
        %s595 = scalar_lea.vmem %s280, 288
        %v596 = vld [vmem:[%s595] sm:$0xff]
        %v597 = vld [vmem:[%s595 + $0x8] sm:$0xff]
        %v598 = vld [vmem:[%s595 + $0x10] sm:$0xff]
        %v599 = vld [vmem:[%s595 + $0x18] sm:$0xff]
        %600 = vset.pattern.permute.xlu0 9
        %601 = vperm.xlu0 %600, %v287
        %v602 = vpop.permute.xlu0 %601
        %v604 = vmul.f32 %v602, %v596
        %v605 = vmul.f32 %v602, %v597
        %v606 = vmul.f32 %v602, %v598
        %v607 = vmul.f32 %v602, %v599
        %s608 = scalar_lea.vmem %s285, 288
        %v609 = vld [vmem:[%s608] sm:$0xff]
        %v610 = vld [vmem:[%s608 + $0x8] sm:$0xff]
        %v611 = vld [vmem:[%s608 + $0x10] sm:$0xff]
        %v612 = vld [vmem:[%s608 + $0x18] sm:$0xff]
        %613 = vset.pattern.permute.xlu0 9
        %614 = vperm.xlu0 %613, %v288
        %v615 = vpop.permute.xlu0 %614
        %v617 = vmul.f32 %v615, %v609
        %v618 = vmul.f32 %v615, %v610
        %v619 = vmul.f32 %v615, %v611
        %v620 = vmul.f32 %v615, %v612
        %v621 = vsub.f32 %v604, %v617
        %v622 = vsub.f32 %v605, %v618
        %v623 = vsub.f32 %v606, %v619
        %v624 = vsub.f32 %v607, %v620
        %v625 = vadd.f32 %v591, %v621
        %v626 = vadd.f32 %v592, %v622
        %v627 = vadd.f32 %v593, %v623
        %v628 = vadd.f32 %v594, %v624
        %s629 = scalar_lea.vmem %s280, 320
        %v630 = vld [vmem:[%s629] sm:$0xff]
        %v631 = vld [vmem:[%s629 + $0x8] sm:$0xff]
        %v632 = vld [vmem:[%s629 + $0x10] sm:$0xff]
        %v633 = vld [vmem:[%s629 + $0x18] sm:$0xff]
        %634 = vset.pattern.permute.xlu0 10
        %635 = vperm.xlu0 %634, %v287
        %v636 = vpop.permute.xlu0 %635
        %v638 = vmul.f32 %v636, %v630
        %v639 = vmul.f32 %v636, %v631
        %v640 = vmul.f32 %v636, %v632
        %v641 = vmul.f32 %v636, %v633
        %s642 = scalar_lea.vmem %s285, 320
        %v643 = vld [vmem:[%s642] sm:$0xff]
        %v644 = vld [vmem:[%s642 + $0x8] sm:$0xff]
        %v645 = vld [vmem:[%s642 + $0x10] sm:$0xff]
        %v646 = vld [vmem:[%s642 + $0x18] sm:$0xff]
        %647 = vset.pattern.permute.xlu0 10
        %648 = vperm.xlu0 %647, %v288
        %v649 = vpop.permute.xlu0 %648
        %v651 = vmul.f32 %v649, %v643
        %v652 = vmul.f32 %v649, %v644
        %v653 = vmul.f32 %v649, %v645
        %v654 = vmul.f32 %v649, %v646
        %v655 = vsub.f32 %v638, %v651
        %v656 = vsub.f32 %v639, %v652
        %v657 = vsub.f32 %v640, %v653
        %v658 = vsub.f32 %v641, %v654
        %v659 = vadd.f32 %v625, %v655
        %v660 = vadd.f32 %v626, %v656
        %v661 = vadd.f32 %v627, %v657
        %v662 = vadd.f32 %v628, %v658
        %s663 = scalar_lea.vmem %s280, 352
        %v664 = vld [vmem:[%s663] sm:$0xff]
        %v665 = vld [vmem:[%s663 + $0x8] sm:$0xff]
        %v666 = vld [vmem:[%s663 + $0x10] sm:$0xff]
        %v667 = vld [vmem:[%s663 + $0x18] sm:$0xff]
        %668 = vset.pattern.permute.xlu0 11
        %669 = vperm.xlu0 %668, %v287
        %v670 = vpop.permute.xlu0 %669
        %v672 = vmul.f32 %v670, %v664
        %v673 = vmul.f32 %v670, %v665
        %v674 = vmul.f32 %v670, %v666
        %v675 = vmul.f32 %v670, %v667
        %s676 = scalar_lea.vmem %s285, 352
        %v677 = vld [vmem:[%s676] sm:$0xff]
        %v678 = vld [vmem:[%s676 + $0x8] sm:$0xff]
        %v679 = vld [vmem:[%s676 + $0x10] sm:$0xff]
        %v680 = vld [vmem:[%s676 + $0x18] sm:$0xff]
        %681 = vset.pattern.permute.xlu0 11
        %682 = vperm.xlu0 %681, %v288
        %v683 = vpop.permute.xlu0 %682
        %v685 = vmul.f32 %v683, %v677
        %v686 = vmul.f32 %v683, %v678
        %v687 = vmul.f32 %v683, %v679
        %v688 = vmul.f32 %v683, %v680
        %v689 = vsub.f32 %v672, %v685
        %v690 = vsub.f32 %v673, %v686
        %v691 = vsub.f32 %v674, %v687
        %v692 = vsub.f32 %v675, %v688
        %v693 = vadd.f32 %v659, %v689
        %v694 = vadd.f32 %v660, %v690
        %v695 = vadd.f32 %v661, %v691
        %v696 = vadd.f32 %v662, %v692
        %s697 = scalar_lea.vmem %s280, 384
        %v698 = vld [vmem:[%s697] sm:$0xff]
        %v699 = vld [vmem:[%s697 + $0x8] sm:$0xff]
        %v700 = vld [vmem:[%s697 + $0x10] sm:$0xff]
        %v701 = vld [vmem:[%s697 + $0x18] sm:$0xff]
        %702 = vset.pattern.permute.xlu0 12
        %703 = vperm.xlu0 %702, %v287
        %v704 = vpop.permute.xlu0 %703
        %v706 = vmul.f32 %v704, %v698
        %v707 = vmul.f32 %v704, %v699
        %v708 = vmul.f32 %v704, %v700
        %v709 = vmul.f32 %v704, %v701
        %s710 = scalar_lea.vmem %s285, 384
        %v711 = vld [vmem:[%s710] sm:$0xff]
        %v712 = vld [vmem:[%s710 + $0x8] sm:$0xff]
        %v713 = vld [vmem:[%s710 + $0x10] sm:$0xff]
        %v714 = vld [vmem:[%s710 + $0x18] sm:$0xff]
        %715 = vset.pattern.permute.xlu0 12
        %716 = vperm.xlu0 %715, %v288
        %v717 = vpop.permute.xlu0 %716
        %v719 = vmul.f32 %v717, %v711
        %v720 = vmul.f32 %v717, %v712
        %v721 = vmul.f32 %v717, %v713
        %v722 = vmul.f32 %v717, %v714
        %v723 = vsub.f32 %v706, %v719
        %v724 = vsub.f32 %v707, %v720
        %v725 = vsub.f32 %v708, %v721
        %v726 = vsub.f32 %v709, %v722
        %v727 = vadd.f32 %v693, %v723
        %v728 = vadd.f32 %v694, %v724
        %v729 = vadd.f32 %v695, %v725
        %v730 = vadd.f32 %v696, %v726
        %s731 = scalar_lea.vmem %s280, 416
        %v732 = vld [vmem:[%s731] sm:$0xff]
        %v733 = vld [vmem:[%s731 + $0x8] sm:$0xff]
        %v734 = vld [vmem:[%s731 + $0x10] sm:$0xff]
        %v735 = vld [vmem:[%s731 + $0x18] sm:$0xff]
        %736 = vset.pattern.permute.xlu0 13
        %737 = vperm.xlu0 %736, %v287
        %v738 = vpop.permute.xlu0 %737
        %v740 = vmul.f32 %v738, %v732
        %v741 = vmul.f32 %v738, %v733
        %v742 = vmul.f32 %v738, %v734
        %v743 = vmul.f32 %v738, %v735
        %s744 = scalar_lea.vmem %s285, 416
        %v745 = vld [vmem:[%s744] sm:$0xff]
        %v746 = vld [vmem:[%s744 + $0x8] sm:$0xff]
        %v747 = vld [vmem:[%s744 + $0x10] sm:$0xff]
        %v748 = vld [vmem:[%s744 + $0x18] sm:$0xff]
        %749 = vset.pattern.permute.xlu0 13
        %750 = vperm.xlu0 %749, %v288
        %v751 = vpop.permute.xlu0 %750
        %v753 = vmul.f32 %v751, %v745
        %v754 = vmul.f32 %v751, %v746
        %v755 = vmul.f32 %v751, %v747
        %v756 = vmul.f32 %v751, %v748
        %v757 = vsub.f32 %v740, %v753
        %v758 = vsub.f32 %v741, %v754
        %v759 = vsub.f32 %v742, %v755
        %v760 = vsub.f32 %v743, %v756
        %v761 = vadd.f32 %v727, %v757
        %v762 = vadd.f32 %v728, %v758
        %v763 = vadd.f32 %v729, %v759
        %v764 = vadd.f32 %v730, %v760
        %s765 = scalar_lea.vmem %s280, 448
        %v766 = vld [vmem:[%s765] sm:$0xff]
        %v767 = vld [vmem:[%s765 + $0x8] sm:$0xff]
        %v768 = vld [vmem:[%s765 + $0x10] sm:$0xff]
        %v769 = vld [vmem:[%s765 + $0x18] sm:$0xff]
        %770 = vset.pattern.permute.xlu0 14
        %771 = vperm.xlu0 %770, %v287
        %v772 = vpop.permute.xlu0 %771
        %v774 = vmul.f32 %v772, %v766
        %v775 = vmul.f32 %v772, %v767
        %v776 = vmul.f32 %v772, %v768
        %v777 = vmul.f32 %v772, %v769
        %s778 = scalar_lea.vmem %s285, 448
        %v779 = vld [vmem:[%s778] sm:$0xff]
        %v780 = vld [vmem:[%s778 + $0x8] sm:$0xff]
        %v781 = vld [vmem:[%s778 + $0x10] sm:$0xff]
        %v782 = vld [vmem:[%s778 + $0x18] sm:$0xff]
        %783 = vset.pattern.permute.xlu0 14
        %784 = vperm.xlu0 %783, %v288
        %v785 = vpop.permute.xlu0 %784
        %v787 = vmul.f32 %v785, %v779
        %v788 = vmul.f32 %v785, %v780
        %v789 = vmul.f32 %v785, %v781
        %v790 = vmul.f32 %v785, %v782
        %v791 = vsub.f32 %v774, %v787
        %v792 = vsub.f32 %v775, %v788
        %v793 = vsub.f32 %v776, %v789
        %v794 = vsub.f32 %v777, %v790
        %v795 = vadd.f32 %v761, %v791
        %v796 = vadd.f32 %v762, %v792
        %v797 = vadd.f32 %v763, %v793
        %v798 = vadd.f32 %v764, %v794
        %s799 = scalar_lea.vmem %s280, 480
        %v800 = vld [vmem:[%s799] sm:$0xff]
        %v801 = vld [vmem:[%s799 + $0x8] sm:$0xff]
        %v802 = vld [vmem:[%s799 + $0x10] sm:$0xff]
        %v803 = vld [vmem:[%s799 + $0x18] sm:$0xff]
        %804 = vset.pattern.permute.xlu0 15
        %805 = vperm.xlu0 %804, %v287
        %v806 = vpop.permute.xlu0 %805
        %v808 = vmul.f32 %v806, %v800
        %v809 = vmul.f32 %v806, %v801
        %v810 = vmul.f32 %v806, %v802
        %v811 = vmul.f32 %v806, %v803
        %s812 = scalar_lea.vmem %s285, 480
        %v813 = vld [vmem:[%s812] sm:$0xff]
        %v814 = vld [vmem:[%s812 + $0x8] sm:$0xff]
        %v815 = vld [vmem:[%s812 + $0x10] sm:$0xff]
        %v816 = vld [vmem:[%s812 + $0x18] sm:$0xff]
        %817 = vset.pattern.permute.xlu0 15
        %818 = vperm.xlu0 %817, %v288
        %v819 = vpop.permute.xlu0 %818
        %v821 = vmul.f32 %v819, %v813
        %v822 = vmul.f32 %v819, %v814
        %v823 = vmul.f32 %v819, %v815
        %v824 = vmul.f32 %v819, %v816
        %v825 = vsub.f32 %v808, %v821
        %v826 = vsub.f32 %v809, %v822
        %v827 = vsub.f32 %v810, %v823
        %v828 = vsub.f32 %v811, %v824
        %v829 = vadd.f32 %v795, %v825
        %v830 = vadd.f32 %v796, %v826
        %v831 = vadd.f32 %v797, %v827
        %v832 = vadd.f32 %v798, %v828
        %s833 = scalar_lea.vmem %s280, 512
        %v834 = vld [vmem:[%s833] sm:$0xff]
        %v835 = vld [vmem:[%s833 + $0x8] sm:$0xff]
        %v836 = vld [vmem:[%s833 + $0x10] sm:$0xff]
        %v837 = vld [vmem:[%s833 + $0x18] sm:$0xff]
        %838 = vset.pattern.permute.xlu0 16
        %839 = vperm.xlu0 %838, %v287
        %v840 = vpop.permute.xlu0 %839
        %v842 = vmul.f32 %v840, %v834
        %v843 = vmul.f32 %v840, %v835
        %v844 = vmul.f32 %v840, %v836
        %v845 = vmul.f32 %v840, %v837
        %s846 = scalar_lea.vmem %s285, 512
        %v847 = vld [vmem:[%s846] sm:$0xff]
        %v848 = vld [vmem:[%s846 + $0x8] sm:$0xff]
        %v849 = vld [vmem:[%s846 + $0x10] sm:$0xff]
        %v850 = vld [vmem:[%s846 + $0x18] sm:$0xff]
        %851 = vset.pattern.permute.xlu0 16
        %852 = vperm.xlu0 %851, %v288
        %v853 = vpop.permute.xlu0 %852
        %v855 = vmul.f32 %v853, %v847
        %v856 = vmul.f32 %v853, %v848
        %v857 = vmul.f32 %v853, %v849
        %v858 = vmul.f32 %v853, %v850
        %v859 = vsub.f32 %v842, %v855
        %v860 = vsub.f32 %v843, %v856
        %v861 = vsub.f32 %v844, %v857
        %v862 = vsub.f32 %v845, %v858
        %v863 = vadd.f32 %v829, %v859
        %v864 = vadd.f32 %v830, %v860
        %v865 = vadd.f32 %v831, %v861
        %v866 = vadd.f32 %v832, %v862
        %s867 = scalar_lea.vmem %s280, 544
        %v868 = vld [vmem:[%s867] sm:$0xff]
        %v869 = vld [vmem:[%s867 + $0x8] sm:$0xff]
        %v870 = vld [vmem:[%s867 + $0x10] sm:$0xff]
        %v871 = vld [vmem:[%s867 + $0x18] sm:$0xff]
        %872 = vset.pattern.permute.xlu0 17
        %873 = vperm.xlu0 %872, %v287
        %v874 = vpop.permute.xlu0 %873
        %v876 = vmul.f32 %v874, %v868
        %v877 = vmul.f32 %v874, %v869
        %v878 = vmul.f32 %v874, %v870
        %v879 = vmul.f32 %v874, %v871
        %s880 = scalar_lea.vmem %s285, 544
        %v881 = vld [vmem:[%s880] sm:$0xff]
        %v882 = vld [vmem:[%s880 + $0x8] sm:$0xff]
        %v883 = vld [vmem:[%s880 + $0x10] sm:$0xff]
        %v884 = vld [vmem:[%s880 + $0x18] sm:$0xff]
        %885 = vset.pattern.permute.xlu0 17
        %886 = vperm.xlu0 %885, %v288
        %v887 = vpop.permute.xlu0 %886
        %v889 = vmul.f32 %v887, %v881
        %v890 = vmul.f32 %v887, %v882
        %v891 = vmul.f32 %v887, %v883
        %v892 = vmul.f32 %v887, %v884
        %v893 = vsub.f32 %v876, %v889
        %v894 = vsub.f32 %v877, %v890
        %v895 = vsub.f32 %v878, %v891
        %v896 = vsub.f32 %v879, %v892
        %v897 = vadd.f32 %v863, %v893
        %v898 = vadd.f32 %v864, %v894
        %v899 = vadd.f32 %v865, %v895
        %v900 = vadd.f32 %v866, %v896
        %s901 = scalar_lea.vmem %s280, 576
        %v902 = vld [vmem:[%s901] sm:$0xff]
        %v903 = vld [vmem:[%s901 + $0x8] sm:$0xff]
        %v904 = vld [vmem:[%s901 + $0x10] sm:$0xff]
        %v905 = vld [vmem:[%s901 + $0x18] sm:$0xff]
        %906 = vset.pattern.permute.xlu0 18
        %907 = vperm.xlu0 %906, %v287
        %v908 = vpop.permute.xlu0 %907
        %v910 = vmul.f32 %v908, %v902
        %v911 = vmul.f32 %v908, %v903
        %v912 = vmul.f32 %v908, %v904
        %v913 = vmul.f32 %v908, %v905
        %s914 = scalar_lea.vmem %s285, 576
        %v915 = vld [vmem:[%s914] sm:$0xff]
        %v916 = vld [vmem:[%s914 + $0x8] sm:$0xff]
        %v917 = vld [vmem:[%s914 + $0x10] sm:$0xff]
        %v918 = vld [vmem:[%s914 + $0x18] sm:$0xff]
        %919 = vset.pattern.permute.xlu0 18
        %920 = vperm.xlu0 %919, %v288
        %v921 = vpop.permute.xlu0 %920
        %v923 = vmul.f32 %v921, %v915
        %v924 = vmul.f32 %v921, %v916
        %v925 = vmul.f32 %v921, %v917
        %v926 = vmul.f32 %v921, %v918
        %v927 = vsub.f32 %v910, %v923
        %v928 = vsub.f32 %v911, %v924
        %v929 = vsub.f32 %v912, %v925
        %v930 = vsub.f32 %v913, %v926
        %v931 = vadd.f32 %v897, %v927
        %v932 = vadd.f32 %v898, %v928
        %v933 = vadd.f32 %v899, %v929
        %v934 = vadd.f32 %v900, %v930
        %s935 = scalar_lea.vmem %s280, 608
        %v936 = vld [vmem:[%s935] sm:$0xff]
        %v937 = vld [vmem:[%s935 + $0x8] sm:$0xff]
        %v938 = vld [vmem:[%s935 + $0x10] sm:$0xff]
        %v939 = vld [vmem:[%s935 + $0x18] sm:$0xff]
        %940 = vset.pattern.permute.xlu0 19
        %941 = vperm.xlu0 %940, %v287
        %v942 = vpop.permute.xlu0 %941
        %v944 = vmul.f32 %v942, %v936
        %v945 = vmul.f32 %v942, %v937
        %v946 = vmul.f32 %v942, %v938
        %v947 = vmul.f32 %v942, %v939
        %s948 = scalar_lea.vmem %s285, 608
        %v949 = vld [vmem:[%s948] sm:$0xff]
        %v950 = vld [vmem:[%s948 + $0x8] sm:$0xff]
        %v951 = vld [vmem:[%s948 + $0x10] sm:$0xff]
        %v952 = vld [vmem:[%s948 + $0x18] sm:$0xff]
        %953 = vset.pattern.permute.xlu0 19
        %954 = vperm.xlu0 %953, %v288
        %v955 = vpop.permute.xlu0 %954
        %v957 = vmul.f32 %v955, %v949
        %v958 = vmul.f32 %v955, %v950
        %v959 = vmul.f32 %v955, %v951
        %v960 = vmul.f32 %v955, %v952
        %v961 = vsub.f32 %v944, %v957
        %v962 = vsub.f32 %v945, %v958
        %v963 = vsub.f32 %v946, %v959
        %v964 = vsub.f32 %v947, %v960
        %v965 = vadd.f32 %v931, %v961
        %v966 = vadd.f32 %v932, %v962
        %v967 = vadd.f32 %v933, %v963
        %v968 = vadd.f32 %v934, %v964
        %s969 = scalar_lea.vmem %s280, 640
        %v970 = vld [vmem:[%s969] sm:$0xff]
        %v971 = vld [vmem:[%s969 + $0x8] sm:$0xff]
        %v972 = vld [vmem:[%s969 + $0x10] sm:$0xff]
        %v973 = vld [vmem:[%s969 + $0x18] sm:$0xff]
        %974 = vset.pattern.permute.xlu0 20
        %975 = vperm.xlu0 %974, %v287
        %v976 = vpop.permute.xlu0 %975
        %v978 = vmul.f32 %v976, %v970
        %v979 = vmul.f32 %v976, %v971
        %v980 = vmul.f32 %v976, %v972
        %v981 = vmul.f32 %v976, %v973
        %s982 = scalar_lea.vmem %s285, 640
        %v983 = vld [vmem:[%s982] sm:$0xff]
        %v984 = vld [vmem:[%s982 + $0x8] sm:$0xff]
        %v985 = vld [vmem:[%s982 + $0x10] sm:$0xff]
        %v986 = vld [vmem:[%s982 + $0x18] sm:$0xff]
        %987 = vset.pattern.permute.xlu0 20
        %988 = vperm.xlu0 %987, %v288
        %v989 = vpop.permute.xlu0 %988
        %v991 = vmul.f32 %v989, %v983
        %v992 = vmul.f32 %v989, %v984
        %v993 = vmul.f32 %v989, %v985
        %v994 = vmul.f32 %v989, %v986
        %v995 = vsub.f32 %v978, %v991
        %v996 = vsub.f32 %v979, %v992
        %v997 = vsub.f32 %v980, %v993
        %v998 = vsub.f32 %v981, %v994
        %v999 = vadd.f32 %v965, %v995
        %v1000 = vadd.f32 %v966, %v996
        %v1001 = vadd.f32 %v967, %v997
        %v1002 = vadd.f32 %v968, %v998
        %s1003 = scalar_lea.vmem %s280, 672
        %v1004 = vld [vmem:[%s1003] sm:$0xff]
        %v1005 = vld [vmem:[%s1003 + $0x8] sm:$0xff]
        %v1006 = vld [vmem:[%s1003 + $0x10] sm:$0xff]
        %v1007 = vld [vmem:[%s1003 + $0x18] sm:$0xff]
        %1008 = vset.pattern.permute.xlu0 21
        %1009 = vperm.xlu0 %1008, %v287
        %v1010 = vpop.permute.xlu0 %1009
        %v1012 = vmul.f32 %v1010, %v1004
        %v1013 = vmul.f32 %v1010, %v1005
        %v1014 = vmul.f32 %v1010, %v1006
        %v1015 = vmul.f32 %v1010, %v1007
        %s1016 = scalar_lea.vmem %s285, 672
        %v1017 = vld [vmem:[%s1016] sm:$0xff]
        %v1018 = vld [vmem:[%s1016 + $0x8] sm:$0xff]
        %v1019 = vld [vmem:[%s1016 + $0x10] sm:$0xff]
        %v1020 = vld [vmem:[%s1016 + $0x18] sm:$0xff]
        %1021 = vset.pattern.permute.xlu0 21
        %1022 = vperm.xlu0 %1021, %v288
        %v1023 = vpop.permute.xlu0 %1022
        %v1025 = vmul.f32 %v1023, %v1017
        %v1026 = vmul.f32 %v1023, %v1018
        %v1027 = vmul.f32 %v1023, %v1019
        %v1028 = vmul.f32 %v1023, %v1020
        %v1029 = vsub.f32 %v1012, %v1025
        %v1030 = vsub.f32 %v1013, %v1026
        %v1031 = vsub.f32 %v1014, %v1027
        %v1032 = vsub.f32 %v1015, %v1028
        %v1033 = vadd.f32 %v999, %v1029
        %v1034 = vadd.f32 %v1000, %v1030
        %v1035 = vadd.f32 %v1001, %v1031
        %v1036 = vadd.f32 %v1002, %v1032
        %s1037 = scalar_lea.vmem %s280, 704
        %v1038 = vld [vmem:[%s1037] sm:$0xff]
        %v1039 = vld [vmem:[%s1037 + $0x8] sm:$0xff]
        %v1040 = vld [vmem:[%s1037 + $0x10] sm:$0xff]
        %v1041 = vld [vmem:[%s1037 + $0x18] sm:$0xff]
        %1042 = vset.pattern.permute.xlu0 22
        %1043 = vperm.xlu0 %1042, %v287
        %v1044 = vpop.permute.xlu0 %1043
        %v1046 = vmul.f32 %v1044, %v1038
        %v1047 = vmul.f32 %v1044, %v1039
        %v1048 = vmul.f32 %v1044, %v1040
        %v1049 = vmul.f32 %v1044, %v1041
        %s1050 = scalar_lea.vmem %s285, 704
        %v1051 = vld [vmem:[%s1050] sm:$0xff]
        %v1052 = vld [vmem:[%s1050 + $0x8] sm:$0xff]
        %v1053 = vld [vmem:[%s1050 + $0x10] sm:$0xff]
        %v1054 = vld [vmem:[%s1050 + $0x18] sm:$0xff]
        %1055 = vset.pattern.permute.xlu0 22
        %1056 = vperm.xlu0 %1055, %v288
        %v1057 = vpop.permute.xlu0 %1056
        %v1059 = vmul.f32 %v1057, %v1051
        %v1060 = vmul.f32 %v1057, %v1052
        %v1061 = vmul.f32 %v1057, %v1053
        %v1062 = vmul.f32 %v1057, %v1054
        %v1063 = vsub.f32 %v1046, %v1059
        %v1064 = vsub.f32 %v1047, %v1060
        %v1065 = vsub.f32 %v1048, %v1061
        %v1066 = vsub.f32 %v1049, %v1062
        %v1067 = vadd.f32 %v1033, %v1063
        %v1068 = vadd.f32 %v1034, %v1064
        %v1069 = vadd.f32 %v1035, %v1065
        %v1070 = vadd.f32 %v1036, %v1066
        %s1071 = scalar_lea.vmem %s280, 736
        %v1072 = vld [vmem:[%s1071] sm:$0xff]
        %v1073 = vld [vmem:[%s1071 + $0x8] sm:$0xff]
        %v1074 = vld [vmem:[%s1071 + $0x10] sm:$0xff]
        %v1075 = vld [vmem:[%s1071 + $0x18] sm:$0xff]
        %1076 = vset.pattern.permute.xlu0 23
        %1077 = vperm.xlu0 %1076, %v287
        %v1078 = vpop.permute.xlu0 %1077
        %v1080 = vmul.f32 %v1078, %v1072
        %v1081 = vmul.f32 %v1078, %v1073
        %v1082 = vmul.f32 %v1078, %v1074
        %v1083 = vmul.f32 %v1078, %v1075
        %s1084 = scalar_lea.vmem %s285, 736
        %v1085 = vld [vmem:[%s1084] sm:$0xff]
        %v1086 = vld [vmem:[%s1084 + $0x8] sm:$0xff]
        %v1087 = vld [vmem:[%s1084 + $0x10] sm:$0xff]
        %v1088 = vld [vmem:[%s1084 + $0x18] sm:$0xff]
        %1089 = vset.pattern.permute.xlu0 23
        %1090 = vperm.xlu0 %1089, %v288
        %v1091 = vpop.permute.xlu0 %1090
        %v1093 = vmul.f32 %v1091, %v1085
        %v1094 = vmul.f32 %v1091, %v1086
        %v1095 = vmul.f32 %v1091, %v1087
        %v1096 = vmul.f32 %v1091, %v1088
        %v1097 = vsub.f32 %v1080, %v1093
        %v1098 = vsub.f32 %v1081, %v1094
        %v1099 = vsub.f32 %v1082, %v1095
        %v1100 = vsub.f32 %v1083, %v1096
        %v1101 = vadd.f32 %v1067, %v1097
        %v1102 = vadd.f32 %v1068, %v1098
        %v1103 = vadd.f32 %v1069, %v1099
        %v1104 = vadd.f32 %v1070, %v1100
        %s1105 = scalar_lea.vmem %s280, 768
        %v1106 = vld [vmem:[%s1105] sm:$0xff]
        %v1107 = vld [vmem:[%s1105 + $0x8] sm:$0xff]
        %v1108 = vld [vmem:[%s1105 + $0x10] sm:$0xff]
        %v1109 = vld [vmem:[%s1105 + $0x18] sm:$0xff]
        %1110 = vset.pattern.permute.xlu0 24
        %1111 = vperm.xlu0 %1110, %v287
        %v1112 = vpop.permute.xlu0 %1111
        %v1114 = vmul.f32 %v1112, %v1106
        %v1115 = vmul.f32 %v1112, %v1107
        %v1116 = vmul.f32 %v1112, %v1108
        %v1117 = vmul.f32 %v1112, %v1109
        %s1118 = scalar_lea.vmem %s285, 768
        %v1119 = vld [vmem:[%s1118] sm:$0xff]
        %v1120 = vld [vmem:[%s1118 + $0x8] sm:$0xff]
        %v1121 = vld [vmem:[%s1118 + $0x10] sm:$0xff]
        %v1122 = vld [vmem:[%s1118 + $0x18] sm:$0xff]
        %1123 = vset.pattern.permute.xlu0 24
        %1124 = vperm.xlu0 %1123, %v288
        %v1125 = vpop.permute.xlu0 %1124
        %v1127 = vmul.f32 %v1125, %v1119
        %v1128 = vmul.f32 %v1125, %v1120
        %v1129 = vmul.f32 %v1125, %v1121
        %v1130 = vmul.f32 %v1125, %v1122
        %v1131 = vsub.f32 %v1114, %v1127
        %v1132 = vsub.f32 %v1115, %v1128
        %v1133 = vsub.f32 %v1116, %v1129
        %v1134 = vsub.f32 %v1117, %v1130
        %v1135 = vadd.f32 %v1101, %v1131
        %v1136 = vadd.f32 %v1102, %v1132
        %v1137 = vadd.f32 %v1103, %v1133
        %v1138 = vadd.f32 %v1104, %v1134
        %s1139 = scalar_lea.vmem %s280, 800
        %v1140 = vld [vmem:[%s1139] sm:$0xff]
        %v1141 = vld [vmem:[%s1139 + $0x8] sm:$0xff]
        %v1142 = vld [vmem:[%s1139 + $0x10] sm:$0xff]
        %v1143 = vld [vmem:[%s1139 + $0x18] sm:$0xff]
        %1144 = vset.pattern.permute.xlu0 25
        %1145 = vperm.xlu0 %1144, %v287
        %v1146 = vpop.permute.xlu0 %1145
        %v1148 = vmul.f32 %v1146, %v1140
        %v1149 = vmul.f32 %v1146, %v1141
        %v1150 = vmul.f32 %v1146, %v1142
        %v1151 = vmul.f32 %v1146, %v1143
        %s1152 = scalar_lea.vmem %s285, 800
        %v1153 = vld [vmem:[%s1152] sm:$0xff]
        %v1154 = vld [vmem:[%s1152 + $0x8] sm:$0xff]
        %v1155 = vld [vmem:[%s1152 + $0x10] sm:$0xff]
        %v1156 = vld [vmem:[%s1152 + $0x18] sm:$0xff]
        %1157 = vset.pattern.permute.xlu0 25
        %1158 = vperm.xlu0 %1157, %v288
        %v1159 = vpop.permute.xlu0 %1158
        %v1161 = vmul.f32 %v1159, %v1153
        %v1162 = vmul.f32 %v1159, %v1154
        %v1163 = vmul.f32 %v1159, %v1155
        %v1164 = vmul.f32 %v1159, %v1156
        %v1165 = vsub.f32 %v1148, %v1161
        %v1166 = vsub.f32 %v1149, %v1162
        %v1167 = vsub.f32 %v1150, %v1163
        %v1168 = vsub.f32 %v1151, %v1164
        %v1169 = vadd.f32 %v1135, %v1165
        %v1170 = vadd.f32 %v1136, %v1166
        %v1171 = vadd.f32 %v1137, %v1167
        %v1172 = vadd.f32 %v1138, %v1168
        %s1173 = scalar_lea.vmem %s280, 832
        %v1174 = vld [vmem:[%s1173] sm:$0xff]
        %v1175 = vld [vmem:[%s1173 + $0x8] sm:$0xff]
        %v1176 = vld [vmem:[%s1173 + $0x10] sm:$0xff]
        %v1177 = vld [vmem:[%s1173 + $0x18] sm:$0xff]
        %1178 = vset.pattern.permute.xlu0 26
        %1179 = vperm.xlu0 %1178, %v287
        %v1180 = vpop.permute.xlu0 %1179
        %v1182 = vmul.f32 %v1180, %v1174
        %v1183 = vmul.f32 %v1180, %v1175
        %v1184 = vmul.f32 %v1180, %v1176
        %v1185 = vmul.f32 %v1180, %v1177
        %s1186 = scalar_lea.vmem %s285, 832
        %v1187 = vld [vmem:[%s1186] sm:$0xff]
        %v1188 = vld [vmem:[%s1186 + $0x8] sm:$0xff]
        %v1189 = vld [vmem:[%s1186 + $0x10] sm:$0xff]
        %v1190 = vld [vmem:[%s1186 + $0x18] sm:$0xff]
        %1191 = vset.pattern.permute.xlu0 26
        %1192 = vperm.xlu0 %1191, %v288
        %v1193 = vpop.permute.xlu0 %1192
        %v1195 = vmul.f32 %v1193, %v1187
        %v1196 = vmul.f32 %v1193, %v1188
        %v1197 = vmul.f32 %v1193, %v1189
        %v1198 = vmul.f32 %v1193, %v1190
        %v1199 = vsub.f32 %v1182, %v1195
        %v1200 = vsub.f32 %v1183, %v1196
        %v1201 = vsub.f32 %v1184, %v1197
        %v1202 = vsub.f32 %v1185, %v1198
        %v1203 = vadd.f32 %v1169, %v1199
        %v1204 = vadd.f32 %v1170, %v1200
        %v1205 = vadd.f32 %v1171, %v1201
        %v1206 = vadd.f32 %v1172, %v1202
        %s1207 = scalar_lea.vmem %s280, 864
        %v1208 = vld [vmem:[%s1207] sm:$0xff]
        %v1209 = vld [vmem:[%s1207 + $0x8] sm:$0xff]
        %v1210 = vld [vmem:[%s1207 + $0x10] sm:$0xff]
        %v1211 = vld [vmem:[%s1207 + $0x18] sm:$0xff]
        %1212 = vset.pattern.permute.xlu0 27
        %1213 = vperm.xlu0 %1212, %v287
        %v1214 = vpop.permute.xlu0 %1213
        %v1216 = vmul.f32 %v1214, %v1208
        %v1217 = vmul.f32 %v1214, %v1209
        %v1218 = vmul.f32 %v1214, %v1210
        %v1219 = vmul.f32 %v1214, %v1211
        %s1220 = scalar_lea.vmem %s285, 864
        %v1221 = vld [vmem:[%s1220] sm:$0xff]
        %v1222 = vld [vmem:[%s1220 + $0x8] sm:$0xff]
        %v1223 = vld [vmem:[%s1220 + $0x10] sm:$0xff]
        %v1224 = vld [vmem:[%s1220 + $0x18] sm:$0xff]
        %1225 = vset.pattern.permute.xlu0 27
        %1226 = vperm.xlu0 %1225, %v288
        %v1227 = vpop.permute.xlu0 %1226
        %v1229 = vmul.f32 %v1227, %v1221
        %v1230 = vmul.f32 %v1227, %v1222
        %v1231 = vmul.f32 %v1227, %v1223
        %v1232 = vmul.f32 %v1227, %v1224
        %v1233 = vsub.f32 %v1216, %v1229
        %v1234 = vsub.f32 %v1217, %v1230
        %v1235 = vsub.f32 %v1218, %v1231
        %v1236 = vsub.f32 %v1219, %v1232
        %v1237 = vadd.f32 %v1203, %v1233
        %v1238 = vadd.f32 %v1204, %v1234
        %v1239 = vadd.f32 %v1205, %v1235
        %v1240 = vadd.f32 %v1206, %v1236
        %s1241 = scalar_lea.vmem %s280, 896
        %v1242 = vld [vmem:[%s1241] sm:$0xff]
        %v1243 = vld [vmem:[%s1241 + $0x8] sm:$0xff]
        %v1244 = vld [vmem:[%s1241 + $0x10] sm:$0xff]
        %v1245 = vld [vmem:[%s1241 + $0x18] sm:$0xff]
        %1246 = vset.pattern.permute.xlu0 28
        %1247 = vperm.xlu0 %1246, %v287
        %v1248 = vpop.permute.xlu0 %1247
        %v1250 = vmul.f32 %v1248, %v1242
        %v1251 = vmul.f32 %v1248, %v1243
        %v1252 = vmul.f32 %v1248, %v1244
        %v1253 = vmul.f32 %v1248, %v1245
        %s1254 = scalar_lea.vmem %s285, 896
        %v1255 = vld [vmem:[%s1254] sm:$0xff]
        %v1256 = vld [vmem:[%s1254 + $0x8] sm:$0xff]
        %v1257 = vld [vmem:[%s1254 + $0x10] sm:$0xff]
        %v1258 = vld [vmem:[%s1254 + $0x18] sm:$0xff]
        %1259 = vset.pattern.permute.xlu0 28
        %1260 = vperm.xlu0 %1259, %v288
        %v1261 = vpop.permute.xlu0 %1260
        %v1263 = vmul.f32 %v1261, %v1255
        %v1264 = vmul.f32 %v1261, %v1256
        %v1265 = vmul.f32 %v1261, %v1257
        %v1266 = vmul.f32 %v1261, %v1258
        %v1267 = vsub.f32 %v1250, %v1263
        %v1268 = vsub.f32 %v1251, %v1264
        %v1269 = vsub.f32 %v1252, %v1265
        %v1270 = vsub.f32 %v1253, %v1266
        %v1271 = vadd.f32 %v1237, %v1267
        %v1272 = vadd.f32 %v1238, %v1268
        %v1273 = vadd.f32 %v1239, %v1269
        %v1274 = vadd.f32 %v1240, %v1270
        %s1275 = scalar_lea.vmem %s280, 928
        %v1276 = vld [vmem:[%s1275] sm:$0xff]
        %v1277 = vld [vmem:[%s1275 + $0x8] sm:$0xff]
        %v1278 = vld [vmem:[%s1275 + $0x10] sm:$0xff]
        %v1279 = vld [vmem:[%s1275 + $0x18] sm:$0xff]
        %1280 = vset.pattern.permute.xlu0 29
        %1281 = vperm.xlu0 %1280, %v287
        %v1282 = vpop.permute.xlu0 %1281
        %v1284 = vmul.f32 %v1282, %v1276
        %v1285 = vmul.f32 %v1282, %v1277
        %v1286 = vmul.f32 %v1282, %v1278
        %v1287 = vmul.f32 %v1282, %v1279
        %s1288 = scalar_lea.vmem %s285, 928
        %v1289 = vld [vmem:[%s1288] sm:$0xff]
        %v1290 = vld [vmem:[%s1288 + $0x8] sm:$0xff]
        %v1291 = vld [vmem:[%s1288 + $0x10] sm:$0xff]
        %v1292 = vld [vmem:[%s1288 + $0x18] sm:$0xff]
        %1293 = vset.pattern.permute.xlu0 29
        %1294 = vperm.xlu0 %1293, %v288
        %v1295 = vpop.permute.xlu0 %1294
        %v1297 = vmul.f32 %v1295, %v1289
        %v1298 = vmul.f32 %v1295, %v1290
        %v1299 = vmul.f32 %v1295, %v1291
        %v1300 = vmul.f32 %v1295, %v1292
        %v1301 = vsub.f32 %v1284, %v1297
        %v1302 = vsub.f32 %v1285, %v1298
        %v1303 = vsub.f32 %v1286, %v1299
        %v1304 = vsub.f32 %v1287, %v1300
        %v1305 = vadd.f32 %v1271, %v1301
        %v1306 = vadd.f32 %v1272, %v1302
        %v1307 = vadd.f32 %v1273, %v1303
        %v1308 = vadd.f32 %v1274, %v1304
        %s1309 = scalar_lea.vmem %s280, 960
        %v1310 = vld [vmem:[%s1309] sm:$0xff]
        %v1311 = vld [vmem:[%s1309 + $0x8] sm:$0xff]
        %v1312 = vld [vmem:[%s1309 + $0x10] sm:$0xff]
        %v1313 = vld [vmem:[%s1309 + $0x18] sm:$0xff]
        %1314 = vset.pattern.permute.xlu0 30
        %1315 = vperm.xlu0 %1314, %v287
        %v1316 = vpop.permute.xlu0 %1315
        %v1318 = vmul.f32 %v1316, %v1310
        %v1319 = vmul.f32 %v1316, %v1311
        %v1320 = vmul.f32 %v1316, %v1312
        %v1321 = vmul.f32 %v1316, %v1313
        %s1322 = scalar_lea.vmem %s285, 960
        %v1323 = vld [vmem:[%s1322] sm:$0xff]
        %v1324 = vld [vmem:[%s1322 + $0x8] sm:$0xff]
        %v1325 = vld [vmem:[%s1322 + $0x10] sm:$0xff]
        %v1326 = vld [vmem:[%s1322 + $0x18] sm:$0xff]
        %1327 = vset.pattern.permute.xlu0 30
        %1328 = vperm.xlu0 %1327, %v288
        %v1329 = vpop.permute.xlu0 %1328
        %v1331 = vmul.f32 %v1329, %v1323
        %v1332 = vmul.f32 %v1329, %v1324
        %v1333 = vmul.f32 %v1329, %v1325
        %v1334 = vmul.f32 %v1329, %v1326
        %v1335 = vsub.f32 %v1318, %v1331
        %v1336 = vsub.f32 %v1319, %v1332
        %v1337 = vsub.f32 %v1320, %v1333
        %v1338 = vsub.f32 %v1321, %v1334
        %v1339 = vadd.f32 %v1305, %v1335
        %v1340 = vadd.f32 %v1306, %v1336
        %v1341 = vadd.f32 %v1307, %v1337
        %v1342 = vadd.f32 %v1308, %v1338
        %s1343 = scalar_lea.vmem %s280, 992
        %v1344 = vld [vmem:[%s1343] sm:$0xff]
        %v1345 = vld [vmem:[%s1343 + $0x8] sm:$0xff]
        %v1346 = vld [vmem:[%s1343 + $0x10] sm:$0xff]
        %v1347 = vld [vmem:[%s1343 + $0x18] sm:$0xff]
        %1348 = vset.pattern.permute.xlu0 31
        %1349 = vperm.xlu0 %1348, %v287
        %v1350 = vpop.permute.xlu0 %1349
        %v1352 = vmul.f32 %v1350, %v1344
        %v1353 = vmul.f32 %v1350, %v1345
        %v1354 = vmul.f32 %v1350, %v1346
        %v1355 = vmul.f32 %v1350, %v1347
        %s1356 = scalar_lea.vmem %s285, 992
        %v1357 = vld [vmem:[%s1356] sm:$0xff]
        %v1358 = vld [vmem:[%s1356 + $0x8] sm:$0xff]
        %v1359 = vld [vmem:[%s1356 + $0x10] sm:$0xff]
        %v1360 = vld [vmem:[%s1356 + $0x18] sm:$0xff]
        %1361 = vset.pattern.permute.xlu0 31
        %1362 = vperm.xlu0 %1361, %v288
        %v1363 = vpop.permute.xlu0 %1362
        %v1365 = vmul.f32 %v1363, %v1357
        %v1366 = vmul.f32 %v1363, %v1358
        %v1367 = vmul.f32 %v1363, %v1359
        %v1368 = vmul.f32 %v1363, %v1360
        %v1369 = vsub.f32 %v1352, %v1365
        %v1370 = vsub.f32 %v1353, %v1366
        %v1371 = vsub.f32 %v1354, %v1367
        %v1372 = vsub.f32 %v1355, %v1368
        %v1373 = vadd.f32 %v1339, %v1369
        %v1374 = vadd.f32 %v1340, %v1370
        %v1375 = vadd.f32 %v1341, %v1371
        %v1376 = vadd.f32 %v1342, %v1372
        %1377 = vst [vmem:[%s261] sm:$0xff] %v1373
        %1378 = vst [vmem:[%s261 + $0x8] sm:$0xff] %v1374
        %1379 = vst [vmem:[%s261 + $0x10] sm:$0xff] %v1375
        %1380 = vst [vmem:[%s261 + $0x18] sm:$0xff] %v1376
        %s1381 = sand.u32 %s148, 1
        %s1382 = scalar_lea.sflag [#allocation3], %s1381
        %s1383 = sand.u32 %s148, 1
        %s1384 = smul.addr %s1383, 32
        %s1385 = scalar_lea.vmem [#allocation2], %s1384
        // Predicated region
        $region37: #{s4d_kernel_pallas.1} parent=35 // pred_check
          %p1386 = pneg %p158
        $region38: #{s4d_kernel_pallas.1} parent=35 // pred_check_branch
          %1388 = sbr.rel (%p1386) target = $region40
        $region39: #{s4d_kernel_pallas.1} parent=35 // pred_region
          %s1389 = smul.u32 4, %s23
          %s1391 = ssub.s32 512, 512
          %1392 = vsyncadd %s1382, %s1391
          %s1393 = smul.addr %s22, 8
          %s1394 = sadd.s32 %s1389, %s1393
          %s1395 = smul.addr %s1394, 128
          %s1396 = scalar_lea.hbm %s4, %s1395
          %s1398 = sshll.u32 %s1385, 4
          %s1399 = int_to_ptr.vmem [resolvable:$true] %s1398
          %1401 = dma.vmem_to_hbm [thread:$0]  %s1399, 512, %s1396, %s1382
        $region40: #{s4d_kernel_pallas.1} parent=35 // pred_fallthru
          _
      $region36: #{s4d_kernel_pallas.1} parent=5 // pred_fallthru
        _
      %p1402 = scmp.le.s32.totalorder 2, %s13
      // Predicated region
      $region41: #{s4d_kernel_pallas.1} parent=5 // pred_check
        %p1403 = pneg %p1402
      $region42: #{s4d_kernel_pallas.1} parent=5 // pred_check_branch
        %1405 = sbr.rel (%p1403) target = $region44
      $region43: #{s4d_kernel_pallas.1} parent=5 // pred_region
        %s1406 = ssub.s32 %s13, 2
        // Predicated region
        $region45: #{s4d_kernel_pallas.1} parent=43 // pred_check
          %p1407 = pneg %p164
        $region46: #{s4d_kernel_pallas.1} parent=43 // pred_check_branch
          %1409 = sbr.rel (%p1407) target = $region48
        $region47: #{s4d_kernel_pallas.1} parent=43 // pred_region
          %s1410 = sand.u32 %s149, 1
          %s1411 = scalar_lea.sflag [#allocation3], %s1410
          %s1412 = sand.u32 %s149, 1
          %s1413 = smul.addr %s1412, 32
          %s1414 = scalar_lea.vmem [#allocation2], %s1413
          %1415 = dma.done %s1411, 512
        $region48: #{s4d_kernel_pallas.1} parent=43 // pred_fallthru
          _
      $region44: #{s4d_kernel_pallas.1} parent=5 // pred_fallthru
        _
    $region6: #{s4d_kernel_pallas.1} parent=1 // loop_footer
      %s17 = sadd.s32 1, %s13
    $region7: #{s4d_kernel_pallas.1} parent=1 // loop_footer_branch
      %12 = sbr.rel target = $region3
    $region8: #{s4d_kernel_pallas.1} parent=1 // loop_exit
      _
    %1416 = vsyncpa [#allocation3], 1
    %s1417 = scalar_lea.sflag [#allocation3], 1
    %1418 = vsyncpa %s1417, 1

</llo_original>
